<compile_context>
chip_gen: v6e
topology: v6e:2x2x1
jax: 0.10.0
libtpu: 0.0.40
codegen_flags: <defaults>
</compile_context>

<pallas_src>
import numpy as np
import jax
import jax.numpy as jnp
from jax.experimental import pallas as pl
from jax.experimental.pallas import tpu as pltpu


def _sattn_kernel(rel_ref, hs_ref, h0_ref, c0_ref, dmask_ref, amask_ref,
                  emb_w_ref, emb_b_ref,
                  w_ih_ref, w_hh_ref, b_g_ref,
                  m_qkv_ref, b_qkv_ref, m_kv_ref, b_kv_ref,
                  w_o_ref, b_o_ref, w_out_ref, b_out_ref,
                  out_ref, hnew_ref, cnew_ref):
    f32 = jnp.float32
    H = hs_ref.shape[1]          # hidden_dim (attention / LSTM hidden width)

    # --- relative-coordinate embedding: Linear(2, out_dim) + ReLU.
    #     Contraction K = 2, so a broadcasted VPU multiply-add beats the MXU.
    rel = rel_ref[...]                                   # (R, 2), R = n*n
    emb_w = emb_w_ref[...]                               # (2, O)
    e = jnp.maximum(rel[:, 0:1] * emb_w[0:1, :]
                    + rel[:, 1:2] * emb_w[1:2, :]
                    + emb_b_ref[...], 0.0)               # (R, O)

    # --- pool LSTMCell over all pair rows at once, 4 gates fused along lanes.
    h0 = h0_ref[...]                                     # (R, H)
    c0 = c0_ref[...]                                     # (R, H)
    gates = (jnp.dot(e, w_ih_ref[...], preferred_element_type=f32)
             + jnp.dot(h0, w_hh_ref[...], preferred_element_type=f32)
             + b_g_ref[...])                             # (R, 4H), order i,f,g,o
    i_g = jax.nn.sigmoid(gates[:, 0:H])
    f_g = jax.nn.sigmoid(gates[:, H:2 * H])
    g_g = jnp.tanh(gates[:, 2 * H:3 * H])
    o_g = jax.nn.sigmoid(gates[:, 3 * H:4 * H])
    c1 = f_g * c0 + i_g * g_g
    h1 = o_g * jnp.tanh(c1)                              # (R, H)

    # Diagonal pair rows (i, i) are dummies: keep the old state (in-kernel,
    # outputs alias the state inputs via input_output_aliases).
    keep = dmask_ref[...] > 0.5                          # (R, 1) bool
    hnew_ref[...] = jnp.where(keep, h0, h1)
    cnew_ref[...] = jnp.where(keep, c0, c1)

    # --- ego q/k/v for all n pedestrians at once (wq/wk/wv folded with the
    #     MHA in_proj into a single (H, 3H) matrix).
    hs = hs_ref[...]                                     # (n, H)
    ego = jnp.dot(hs, m_qkv_ref[...], preferred_element_type=f32) + b_qkv_ref[...]
    q2 = ego[:, 0:H]
    k_self = ego[:, H:2 * H]
    v_self = ego[:, 2 * H:3 * H]

    # --- neighbour k/v from the pooled hidden states (dummy rows masked later).
    nb = jnp.dot(h1, m_kv_ref[...], preferred_element_type=f32) + b_kv_ref[...]
    k_nb = nb[:, 0:H]                                    # (R, H)
    v_nb = nb[:, H:2 * H]                                # (R, H)

    # --- single-head attention; only the ego query (token 0) is ever read.
    q2s = q2 * (float(H) ** -0.5)
    s_self = jnp.sum(q2s * k_self, axis=-1, keepdims=True)           # (n, 1)
    s_nb = jax.lax.dot_general(q2s, k_nb, (((1,), (1,)), ((), ())),
                               preferred_element_type=f32)           # (n, R)
    am = amask_ref[...]                                  # (n, R), 1.0 = valid neighbour
    s_nb = s_nb * am - 1e30 * (1.0 - am)

    m = jnp.maximum(jnp.max(s_nb, axis=-1, keepdims=True), s_self)   # (n, 1)
    e_self = jnp.exp(s_self - m)
    e_nb = jnp.exp(s_nb - m) * am
    denom = e_self + jnp.sum(e_nb, axis=-1, keepdims=True)
    ctx = (e_self * v_self
           + jnp.dot(e_nb, v_nb, preferred_element_type=f32)) / denom  # (n, H)

    attn_out = jnp.dot(ctx, w_o_ref[...], preferred_element_type=f32) + b_o_ref[...]
    out_ref[...] = (jnp.dot(attn_out, w_out_ref[...], preferred_element_type=f32)
                    + b_out_ref[...])                    # (n, O)


def _full_spec(x):
    nd = x.ndim
    return pl.BlockSpec(x.shape, lambda i, _nd=nd: (0,) * _nd)


@jax.jit
def sattention_pallas(params, hidden_state, obs2, h_state, c_state):
    """Pallas forward of SAttention (all-visible track_mask, n >= 2).

    hidden_state: (n, H); obs2: (n, 2); h_state/c_state: (n, n, H) pooled LSTM
    state (diagonal entries unused).  Returns (out (n, O), h_new, c_new).
    """
    n, H = hidden_state.shape
    assert n >= 2, "SAttention needs at least one visible neighbour (n >= 2)"
    O = params['b_out'].shape[1]
    R = n * n

    rel = (obs2[None, :, :] - obs2[:, None, :]).reshape(R, 2)   # row i*n+j = obs[j]-obs[i]
    h0 = h_state.reshape(R, H)
    c0 = c_state.reshape(R, H)

    # Static structural masks (depend only on n).
    diag = np.zeros((R, 1), np.float32)
    diag[np.arange(n) * (n + 1), 0] = 1.0                       # diagonal pair rows
    amask = np.zeros((n, R), np.float32)                        # valid neighbour columns
    for i in range(n):
        amask[i, i * n:(i + 1) * n] = 1.0
        amask[i, i * n + i] = 0.0

    inputs = [rel, hidden_state, h0, c0, jnp.asarray(diag), jnp.asarray(amask),
              params['emb_w_t'], params['emb_b'],
              params['w_ih_p'], params['w_hh_p'], params['b_g'],
              params['m_qkv'], params['b_qkv'], params['m_kv'], params['b_kv'],
              params['w_o_t'], params['b_o'], params['w_out_t'], params['b_out']]

    out, h_new, c_new = pl.pallas_call(
        _sattn_kernel,
        grid=(1,),   # collapsed grid: the whole scene fits comfortably in VMEM
        in_specs=[_full_spec(x) for x in inputs],
        out_specs=[
            pl.BlockSpec((n, O), lambda i: (0, 0)),
            pl.BlockSpec((R, H), lambda i: (0, 0)),
            pl.BlockSpec((R, H), lambda i: (0, 0)),
        ],
        out_shape=[
            jax.ShapeDtypeStruct((n, O), jnp.float32),
            jax.ShapeDtypeStruct((R, H), jnp.float32),
            jax.ShapeDtypeStruct((R, H), jnp.float32),
        ],
        # pooled-state outputs reuse the state input buffers
        input_output_aliases={2: 1, 3: 2},
        compiler_params=pltpu.CompilerParams(
            dimension_semantics=("arbitrary",)),
    )(*inputs)

    return out, h_new.reshape(n, n, H), c_new.reshape(n, n, H)


def init_params(key, hidden_dim, out_dim):
    """Deterministic PyTorch-style init; returns (raw numpy params, packed kernel params)."""
    H, O = hidden_dim, out_dim
    ks = jax.random.split(key, 15)

    def unif(k, shape, fan_in):
        b = 1.0 / np.sqrt(fan_in)
        return np.asarray(jax.random.uniform(k, shape, jnp.float32, -b, b))

    # Raw parameters in PyTorch layout: (out_features, in_features).
    raw = dict(
        emb_w=unif(ks[0], (O, 2), 2),            # embedding Linear(2, out_dim)
        emb_b=unif(ks[1], (O,), 2),
        w_ih=unif(ks[2], (4 * H, O), H),         # LSTMCell(out_dim, hidden_dim), gates i,f,g,o
        w_hh=unif(ks[3], (4 * H, H), H),
        b_ih=unif(ks[4], (4 * H,), H),
        b_hh=unif(ks[5], (4 * H,), H),
        wq=unif(ks[6], (H, H), H),               # bias-free Linear(H, H)
        wk=unif(ks[7], (H, H), H),
        wv=unif(ks[8], (H, H), H),
        mha_in_w=unif(ks[9], (3 * H, H), H),     # MultiheadAttention in_proj
        mha_in_b=unif(ks[10], (3 * H,), H),
        mha_out_w=unif(ks[11], (H, H), H),
        mha_out_b=unif(ks[12], (H,), H),
        out_w=unif(ks[13], (O, H), H),           # out_projection Linear(H, out_dim)
        out_b=unif(ks[14], (O,), H),
    )

    # Fold wq/wk/wv with the MHA in_proj: x@wq.T@Wq_in.T == x@(wq.T@Wq_in.T).
    r64 = {k: v.astype(np.float64) for k, v in raw.items()}
    Wq_in, Wk_in, Wv_in = np.split(r64['mha_in_w'], 3, axis=0)
    bq, bk, bv = np.split(r64['mha_in_b'], 3)
    Mq = (r64['wq'].T @ Wq_in.T).astype(np.float32)
    Mk = (r64['wk'].T @ Wk_in.T).astype(np.float32)
    Mv = (r64['wv'].T @ Wv_in.T).astype(np.float32)

    f32 = np.float32
    kparams = dict(
        emb_w_t=np.ascontiguousarray(raw['emb_w'].T),            # (2, O)
        emb_b=raw['emb_b'].reshape(1, O),
        w_ih_p=np.ascontiguousarray(raw['w_ih'].T),              # (O, 4H) fused gates
        w_hh_p=np.ascontiguousarray(raw['w_hh'].T),              # (H, 4H)
        b_g=(raw['b_ih'] + raw['b_hh']).reshape(1, 4 * H),
        m_qkv=np.concatenate([Mq, Mk, Mv], axis=1),              # (H, 3H) ego q/k/v
        b_qkv=np.concatenate([bq, bk, bv]).astype(f32).reshape(1, 3 * H),
        m_kv=np.concatenate([Mk, Mv], axis=1),                   # (H, 2H) neighbour k/v
        b_kv=np.concatenate([bk, bv]).astype(f32).reshape(1, 2 * H),
        w_o_t=np.ascontiguousarray(raw['mha_out_w'].T),          # (H, H)
        b_o=raw['mha_out_b'].reshape(1, H),
        w_out_t=np.ascontiguousarray(raw['out_w'].T),            # (H, O)
        b_out=raw['out_b'].reshape(1, O),
    )
    kparams = {k: jnp.asarray(v) for k, v in kparams.items()}
    return raw, kparams


def reference_forward(raw, hidden_state, obs, h_state, c_state):
    """Pure-NumPy (float64) mirror of SAttention.forward with all-True track_mask."""
    n = obs.shape[0]
    H = raw['w_hh'].shape[1]
    sig = lambda x: 1.0 / (1.0 + np.exp(-x))

    rel = obs[None, :, :] - obs[:, None, :]              # rel[i, j] = obs[j] - obs[i]
    off = ~np.eye(n, dtype=bool)
    rel_flat = rel[off]                                  # (n*(n-1), 2), row-major pairs
    h0 = h_state[off]
    c0 = c_state[off]

    e = np.maximum(rel_flat @ raw['emb_w'].T + raw['emb_b'], 0.0)
    gates = e @ raw['w_ih'].T + raw['b_ih'] + h0 @ raw['w_hh'].T + raw['b_hh']
    gi, gf, gg, go = np.split(gates, 4, axis=1)
    c1 = sig(gf) * c0 + sig(gi) * np.tanh(gg)
    h1 = sig(go) * np.tanh(c1)

    embedded = np.concatenate([hidden_state[:, None, :],
                               h1.reshape(n, n - 1, H)], axis=1)   # (batch, seq, H)
    q = embedded @ raw['wq'].T
    k = embedded @ raw['wk'].T
    v = embedded @ raw['wv'].T
    Wq, Wk, Wv = np.split(raw['mha_in_w'], 3, axis=0)
    bq, bk, bv = np.split(raw['mha_in_b'], 3)
    q2 = q @ Wq.T + bq
    k2 = k @ Wk.T + bk
    v2 = v @ Wv.T + bv
    scores = np.einsum('bqh,bkh->bqk', q2 / np.sqrt(H), k2)
    scores -= scores.max(axis=-1, keepdims=True)
    w = np.exp(scores)
    w /= w.sum(axis=-1, keepdims=True)
    ctx = np.einsum('bqk,bkh->bqh', w, v2)
    mha_out = ctx @ raw['mha_out_w'].T + raw['mha_out_b']
    out = mha_out[:, 0, :] @ raw['out_w'].T + raw['out_b']          # attn_output[0]

    h_new = h_state.copy(); h_new[off] = h1
    c_new = c_state.copy(); c_new[off] = c1
    return out, h_new, c_new


if __name__ == "__main__":
    # n pedestrians, hidden_dim (LSTM hidden / attention width), out_dim.
    n, H, O = 4, 128, 32

    key = jax.random.PRNGKey(0)
    k_param, k_hs, k_obs1, k_obs2, k_h0, k_c0 = jax.random.split(key, 6)
    raw, kparams = init_params(k_param, H, O)

    hidden_state = jax.random.normal(k_hs, (n, H), jnp.float32)
    obs1 = jax.random.normal(k_obs1, (n, 2), jnp.float32)   # unused by forward (as in PyTorch)
    obs2 = jax.random.normal(k_obs2, (n, 2), jnp.float32)
    h_state = 0.5 * jax.random.normal(k_h0, (n, n, H), jnp.float32)
    c_state = 0.5 * jax.random.normal(k_c0, (n, n, H), jnp.float32)

    out, h_new, c_new = sattention_pallas(kparams, hidden_state, obs2, h_state, c_state)
    jax.block_until_ready((out, h_new, c_new))

    raw64 = {k: v.astype(np.float64) for k, v in raw.items()}
    ref_out, ref_h, ref_c = reference_forward(
        raw64,
        np.asarray(hidden_state, np.float64), np.asarray(obs2, np.float64),
        np.asarray(h_state, np.float64), np.asarray(c_state, np.float64))

    # Default (bf16-pass) MXU precision instead of HIGHEST -> relaxed tolerance
    # against the float64 reference.
    np.testing.assert_allclose(np.asarray(out), ref_out, rtol=1e-2, atol=1e-2)
    np.testing.assert_allclose(np.asarray(h_new), ref_h, rtol=1e-2, atol=1e-2)
    np.testing.assert_allclose(np.asarray(c_new), ref_c, rtol=1e-2, atol=1e-2)
    print("KERNEL_OK")
</pallas_src>

<mosaic_0001>
module attributes {stable_mosaic.version = 11 : i64} {
  func.func @_sattn_kernel(%arg0: i32, %arg1: memref<16x2xf32, #tpu.memory_space<vmem>>, %arg2: memref<4x128xf32, #tpu.memory_space<vmem>>, %arg3: memref<16x128xf32, #tpu.memory_space<vmem>>, %arg4: memref<16x128xf32, #tpu.memory_space<vmem>>, %arg5: memref<16x1xf32, #tpu.memory_space<vmem>>, %arg6: memref<4x16xf32, #tpu.memory_space<vmem>>, %arg7: memref<2x32xf32, #tpu.memory_space<vmem>>, %arg8: memref<1x32xf32, #tpu.memory_space<vmem>>, %arg9: memref<32x512xf32, #tpu.memory_space<vmem>>, %arg10: memref<128x512xf32, #tpu.memory_space<vmem>>, %arg11: memref<1x512xf32, #tpu.memory_space<vmem>>, %arg12: memref<128x384xf32, #tpu.memory_space<vmem>>, %arg13: memref<1x384xf32, #tpu.memory_space<vmem>>, %arg14: memref<128x256xf32, #tpu.memory_space<vmem>>, %arg15: memref<1x256xf32, #tpu.memory_space<vmem>>, %arg16: memref<128x128xf32, #tpu.memory_space<vmem>>, %arg17: memref<1x128xf32, #tpu.memory_space<vmem>>, %arg18: memref<128x32xf32, #tpu.memory_space<vmem>>, %arg19: memref<1x32xf32, #tpu.memory_space<vmem>>, %arg20: memref<4x32xf32, #tpu.memory_space<vmem>>, %arg21: memref<16x128xf32, #tpu.memory_space<vmem>>, %arg22: memref<16x128xf32, #tpu.memory_space<vmem>>) attributes {dimension_semantics = [#tpu.dimension_semantics<arbitrary>], iteration_bounds = array<i64: 1>, scalar_prefetch = 0 : i64, scratch_operands = 0 : i64, tpu.core_type = #tpu.core_type<tc>, window_params = [{pipeline_mode = #tpu.pipeline_mode<synchronous>, transform_indices = @transform_0, window_bounds = array<i64: 16, 2>}, {pipeline_mode = #tpu.pipeline_mode<synchronous>, transform_indices = @transform_1, window_bounds = array<i64: 4, 128>}, {pipeline_mode = #tpu.pipeline_mode<synchronous>, transform_indices = @transform_2, window_bounds = array<i64: 16, 128>}, {pipeline_mode = #tpu.pipeline_mode<synchronous>, transform_indices = @transform_3, window_bounds = array<i64: 16, 128>}, {pipeline_mode = #tpu.pipeline_mode<synchronous>, transform_indices = @transform_4, window_bounds = array<i64: 16, 1>}, {pipeline_mode = #tpu.pipeline_mode<synchronous>, transform_indices = @transform_5, window_bounds = array<i64: 4, 16>}, {pipeline_mode = #tpu.pipeline_mode<synchronous>, transform_indices = @transform_6, window_bounds = array<i64: 2, 32>}, {pipeline_mode = #tpu.pipeline_mode<synchronous>, transform_indices = @transform_7, window_bounds = array<i64: 1, 32>}, {pipeline_mode = #tpu.pipeline_mode<synchronous>, transform_indices = @transform_8, window_bounds = array<i64: 32, 512>}, {pipeline_mode = #tpu.pipeline_mode<synchronous>, transform_indices = @transform_9, window_bounds = array<i64: 128, 512>}, {pipeline_mode = #tpu.pipeline_mode<synchronous>, transform_indices = @transform_10, window_bounds = array<i64: 1, 512>}, {pipeline_mode = #tpu.pipeline_mode<synchronous>, transform_indices = @transform_11, window_bounds = array<i64: 128, 384>}, {pipeline_mode = #tpu.pipeline_mode<synchronous>, transform_indices = @transform_12, window_bounds = array<i64: 1, 384>}, {pipeline_mode = #tpu.pipeline_mode<synchronous>, transform_indices = @transform_13, window_bounds = array<i64: 128, 256>}, {pipeline_mode = #tpu.pipeline_mode<synchronous>, transform_indices = @transform_14, window_bounds = array<i64: 1, 256>}, {pipeline_mode = #tpu.pipeline_mode<synchronous>, transform_indices = @transform_15, window_bounds = array<i64: 128, 128>}, {pipeline_mode = #tpu.pipeline_mode<synchronous>, transform_indices = @transform_16, window_bounds = array<i64: 1, 128>}, {pipeline_mode = #tpu.pipeline_mode<synchronous>, transform_indices = @transform_17, window_bounds = array<i64: 128, 32>}, {pipeline_mode = #tpu.pipeline_mode<synchronous>, transform_indices = @transform_18, window_bounds = array<i64: 1, 32>}, {pipeline_mode = #tpu.pipeline_mode<synchronous>, transform_indices = @transform_19, window_bounds = array<i64: 4, 32>}, {pipeline_mode = #tpu.pipeline_mode<synchronous>, transform_indices = @transform_20, window_bounds = array<i64: 16, 128>}, {pipeline_mode = #tpu.pipeline_mode<synchronous>, transform_indices = @transform_21, window_bounds = array<i64: 16, 128>}]} {
    %c0 = arith.constant 0 : index
    %c0_0 = arith.constant 0 : index
    %0 = vector.load %arg1[%c0, %c0_0] : memref<16x2xf32, #tpu.memory_space<vmem>>, vector<16x2xf32>
    %c0_1 = arith.constant 0 : index
    %c0_2 = arith.constant 0 : index
    %1 = vector.load %arg7[%c0_1, %c0_2] : memref<2x32xf32, #tpu.memory_space<vmem>>, vector<2x32xf32>
    %2 = vector.extract_strided_slice %0 {offsets = [0, 0], sizes = [16, 1], strides = [1, 1]} : vector<16x2xf32> to vector<16x1xf32>
    %3 = vector.extract_strided_slice %1 {offsets = [0, 0], sizes = [1, 32], strides = [1, 1]} : vector<2x32xf32> to vector<1x32xf32>
    %4 = vector.broadcast %2 : vector<16x1xf32> to vector<16x32xf32>
    %5 = vector.broadcast %3 : vector<1x32xf32> to vector<16x32xf32>
    %6 = arith.mulf %4, %5 : vector<16x32xf32>
    %7 = vector.extract_strided_slice %0 {offsets = [0, 1], sizes = [16, 1], strides = [1, 1]} : vector<16x2xf32> to vector<16x1xf32>
    %8 = vector.extract_strided_slice %1 {offsets = [1, 0], sizes = [1, 32], strides = [1, 1]} : vector<2x32xf32> to vector<1x32xf32>
    %9 = vector.broadcast %7 : vector<16x1xf32> to vector<16x32xf32>
    %10 = vector.broadcast %8 : vector<1x32xf32> to vector<16x32xf32>
    %11 = arith.mulf %9, %10 : vector<16x32xf32>
    %12 = arith.addf %6, %11 : vector<16x32xf32>
    %c0_3 = arith.constant 0 : index
    %c0_4 = arith.constant 0 : index
    %13 = vector.load %arg8[%c0_3, %c0_4] : memref<1x32xf32, #tpu.memory_space<vmem>>, vector<1x32xf32>
    %14 = vector.broadcast %13 : vector<1x32xf32> to vector<16x32xf32>
    %15 = arith.addf %12, %14 : vector<16x32xf32>
    %cst = arith.constant 0.000000e+00 : f32
    %16 = vector.broadcast %cst : f32 to vector<16x32xf32>
    %17 = arith.maximumf %15, %16 : vector<16x32xf32>
    %c0_5 = arith.constant 0 : index
    %c0_6 = arith.constant 0 : index
    %18 = vector.load %arg3[%c0_5, %c0_6] : memref<16x128xf32, #tpu.memory_space<vmem>>, vector<16x128xf32>
    %c0_7 = arith.constant 0 : index
    %c0_8 = arith.constant 0 : index
    %19 = vector.load %arg4[%c0_7, %c0_8] : memref<16x128xf32, #tpu.memory_space<vmem>>, vector<16x128xf32>
    %c0_9 = arith.constant 0 : index
    %c0_10 = arith.constant 0 : index
    %20 = vector.load %arg9[%c0_9, %c0_10] : memref<32x512xf32, #tpu.memory_space<vmem>>, vector<32x512xf32>
    %cst_11 = arith.constant dense<0.000000e+00> : vector<16x512xf32>
    %21 = tpu.matmul %17, %20, %cst_11 {dimension_numbers = #tpu.dot_dimension_numbers<[1], [0], [0], [1], [0, 0, 1, 1], [], []>} : vector<16x32xf32>, vector<32x512xf32>, vector<16x512xf32> -> vector<16x512xf32>
    %c0_12 = arith.constant 0 : index
    %c0_13 = arith.constant 0 : index
    %22 = vector.load %arg10[%c0_12, %c0_13] : memref<128x512xf32, #tpu.memory_space<vmem>>, vector<128x512xf32>
    %cst_14 = arith.constant dense<0.000000e+00> : vector<16x512xf32>
    %23 = tpu.matmul %18, %22, %cst_14 {dimension_numbers = #tpu.dot_dimension_numbers<[1], [0], [0], [1], [0, 0, 1, 1], [], []>} : vector<16x128xf32>, vector<128x512xf32>, vector<16x512xf32> -> vector<16x512xf32>
    %24 = arith.addf %21, %23 : vector<16x512xf32>
    %c0_15 = arith.constant 0 : index
    %c0_16 = arith.constant 0 : index
    %25 = vector.load %arg11[%c0_15, %c0_16] : memref<1x512xf32, #tpu.memory_space<vmem>>, vector<1x512xf32>
    %26 = vector.broadcast %25 : vector<1x512xf32> to vector<16x512xf32>
    %27 = arith.addf %24, %26 : vector<16x512xf32>
    %28 = vector.extract_strided_slice %27 {offsets = [0, 0], sizes = [16, 128], strides = [1, 1]} : vector<16x512xf32> to vector<16x128xf32>
    %29 = arith.negf %28 : vector<16x128xf32>
    %30 = math.exp %29 : vector<16x128xf32>
    %cst_17 = arith.constant 1.000000e+00 : f32
    %31 = vector.broadcast %cst_17 : f32 to vector<16x128xf32>
    %32 = arith.addf %31, %30 : vector<16x128xf32>
    %33 = arith.divf %31, %32 : vector<16x128xf32>
    %34 = vector.extract_strided_slice %27 {offsets = [0, 128], sizes = [16, 128], strides = [1, 1]} : vector<16x512xf32> to vector<16x128xf32>
    %35 = arith.negf %34 : vector<16x128xf32>
    %36 = math.exp %35 : vector<16x128xf32>
    %cst_18 = arith.constant 1.000000e+00 : f32
    %37 = vector.broadcast %cst_18 : f32 to vector<16x128xf32>
    %38 = arith.addf %37, %36 : vector<16x128xf32>
    %39 = arith.divf %37, %38 : vector<16x128xf32>
    %40 = vector.extract_strided_slice %27 {offsets = [0, 256], sizes = [16, 128], strides = [1, 1]} : vector<16x512xf32> to vector<16x128xf32>
    %41 = math.tanh %40 : vector<16x128xf32>
    %42 = vector.extract_strided_slice %27 {offsets = [0, 384], sizes = [16, 128], strides = [1, 1]} : vector<16x512xf32> to vector<16x128xf32>
    %43 = arith.negf %42 : vector<16x128xf32>
    %44 = math.exp %43 : vector<16x128xf32>
    %cst_19 = arith.constant 1.000000e+00 : f32
    %45 = vector.broadcast %cst_19 : f32 to vector<16x128xf32>
    %46 = arith.addf %45, %44 : vector<16x128xf32>
    %47 = arith.divf %45, %46 : vector<16x128xf32>
    %48 = arith.mulf %39, %19 : vector<16x128xf32>
    %49 = arith.mulf %33, %41 : vector<16x128xf32>
    %50 = arith.addf %48, %49 : vector<16x128xf32>
    %51 = math.tanh %50 : vector<16x128xf32>
    %52 = arith.mulf %47, %51 : vector<16x128xf32>
    %c0_20 = arith.constant 0 : index
    %c0_21 = arith.constant 0 : index
    %53 = vector.load %arg5[%c0_20, %c0_21] : memref<16x1xf32, #tpu.memory_space<vmem>>, vector<16x1xf32>
    %cst_22 = arith.constant 5.000000e-01 : f32
    %54 = vector.broadcast %cst_22 : f32 to vector<16x1xf32>
    %55 = arith.cmpf ogt, %53, %54 : vector<16x1xf32>
    %56 = vector.shape_cast %55 : vector<16x1xi1> to vector<16x1xi1>
    %57 = vector.broadcast %56 : vector<16x1xi1> to vector<16x128xi1>
    %58 = arith.select %57, %18, %52 : vector<16x128xi1>, vector<16x128xf32>
    %c0_23 = arith.constant 0 : index
    %c0_24 = arith.constant 0 : index
    %59 = vector.load %arg21[%c0_23, %c0_24] : memref<16x128xf32, #tpu.memory_space<vmem>>, vector<16x128xf32>
    tpu.vector_store %arg21[%c0_23, %c0_24], %58 {strides = array<i32>} : memref<16x128xf32, #tpu.memory_space<vmem>>, vector<16x128xf32>,
    %60 = vector.shape_cast %55 : vector<16x1xi1> to vector<16x1xi1>
    %61 = vector.broadcast %60 : vector<16x1xi1> to vector<16x128xi1>
    %62 = arith.select %61, %19, %50 : vector<16x128xi1>, vector<16x128xf32>
    %c0_25 = arith.constant 0 : index
    %c0_26 = arith.constant 0 : index
    %63 = vector.load %arg22[%c0_25, %c0_26] : memref<16x128xf32, #tpu.memory_space<vmem>>, vector<16x128xf32>
    tpu.vector_store %arg22[%c0_25, %c0_26], %62 {strides = array<i32>} : memref<16x128xf32, #tpu.memory_space<vmem>>, vector<16x128xf32>,
    %c0_27 = arith.constant 0 : index
    %c0_28 = arith.constant 0 : index
    %64 = vector.load %arg2[%c0_27, %c0_28] : memref<4x128xf32, #tpu.memory_space<vmem>>, vector<4x128xf32>
    %c0_29 = arith.constant 0 : index
    %c0_30 = arith.constant 0 : index
    %65 = vector.load %arg12[%c0_29, %c0_30] : memref<128x384xf32, #tpu.memory_space<vmem>>, vector<128x384xf32>
    %cst_31 = arith.constant dense<0.000000e+00> : vector<4x384xf32>
    %66 = tpu.matmul %64, %65, %cst_31 {dimension_numbers = #tpu.dot_dimension_numbers<[1], [0], [0], [1], [0, 0, 1, 1], [], []>} : vector<4x128xf32>, vector<128x384xf32>, vector<4x384xf32> -> vector<4x384xf32>
    %c0_32 = arith.constant 0 : index
    %c0_33 = arith.constant 0 : index
    %67 = vector.load %arg13[%c0_32, %c0_33] : memref<1x384xf32, #tpu.memory_space<vmem>>, vector<1x384xf32>
    %68 = vector.broadcast %67 : vector<1x384xf32> to vector<4x384xf32>
    %69 = arith.addf %66, %68 : vector<4x384xf32>
    %70 = vector.extract_strided_slice %69 {offsets = [0, 0], sizes = [4, 128], strides = [1, 1]} : vector<4x384xf32> to vector<4x128xf32>
    %71 = vector.extract_strided_slice %69 {offsets = [0, 128], sizes = [4, 128], strides = [1, 1]} : vector<4x384xf32> to vector<4x128xf32>
    %72 = vector.extract_strided_slice %69 {offsets = [0, 256], sizes = [4, 128], strides = [1, 1]} : vector<4x384xf32> to vector<4x128xf32>
    %c0_34 = arith.constant 0 : index
    %c0_35 = arith.constant 0 : index
    %73 = vector.load %arg14[%c0_34, %c0_35] : memref<128x256xf32, #tpu.memory_space<vmem>>, vector<128x256xf32>
    %cst_36 = arith.constant dense<0.000000e+00> : vector<16x256xf32>
    %74 = tpu.matmul %52, %73, %cst_36 {dimension_numbers = #tpu.dot_dimension_numbers<[1], [0], [0], [1], [0, 0, 1, 1], [], []>} : vector<16x128xf32>, vector<128x256xf32>, vector<16x256xf32> -> vector<16x256xf32>
    %c0_37 = arith.constant 0 : index
    %c0_38 = arith.constant 0 : index
    %75 = vector.load %arg15[%c0_37, %c0_38] : memref<1x256xf32, #tpu.memory_space<vmem>>, vector<1x256xf32>
    %76 = vector.broadcast %75 : vector<1x256xf32> to vector<16x256xf32>
    %77 = arith.addf %74, %76 : vector<16x256xf32>
    %78 = vector.extract_strided_slice %77 {offsets = [0, 0], sizes = [16, 128], strides = [1, 1]} : vector<16x256xf32> to vector<16x128xf32>
    %79 = vector.extract_strided_slice %77 {offsets = [0, 128], sizes = [16, 128], strides = [1, 1]} : vector<16x256xf32> to vector<16x128xf32>
    %cst_39 = arith.constant 0.0883883461 : f32
    %80 = vector.broadcast %cst_39 : f32 to vector<4x128xf32>
    %81 = arith.mulf %70, %80 : vector<4x128xf32>
    %82 = arith.mulf %81, %71 : vector<4x128xf32>
    %cst_40 = arith.constant dense<0.000000e+00> : vector<4xf32>
    %83 = vector.multi_reduction <add>, %82, %cst_40 [1] : vector<4x128xf32> to vector<4xf32>
    %84 = vector.shape_cast %83 : vector<4xf32> to vector<4x1xf32>
    %cst_41 = arith.constant dense<0.000000e+00> : vector<4x16xf32>
    %85 = tpu.matmul %81, %78, %cst_41 {dimension_numbers = #tpu.dot_dimension_numbers<[1], [1], [0], [0], [0, 0, 1, 0], [], []>} : vector<4x128xf32>, vector<16x128xf32>, vector<4x16xf32> -> vector<4x16xf32>
    %c0_42 = arith.constant 0 : index
    %c0_43 = arith.constant 0 : index
    %86 = vector.load %arg6[%c0_42, %c0_43] : memref<4x16xf32, #tpu.memory_space<vmem>>, vector<4x16xf32>
    %87 = arith.mulf %85, %86 : vector<4x16xf32>
    %cst_44 = arith.constant 1.000000e+00 : f32
    %88 = vector.broadcast %cst_44 : f32 to vector<4x16xf32>
    %89 = arith.subf %88, %86 : vector<4x16xf32>
    %cst_45 = arith.constant 1.000000e+30 : f32
    %90 = vector.broadcast %cst_45 : f32 to vector<4x16xf32>
    %91 = arith.mulf %90, %89 : vector<4x16xf32>
    %92 = arith.subf %87, %91 : vector<4x16xf32>
    %cst_46 = arith.constant dense<0xFF800000> : vector<4xf32>
    %93 = vector.multi_reduction <maximumf>, %92, %cst_46 [1] : vector<4x16xf32> to vector<4xf32>
    %94 = vector.shape_cast %93 : vector<4xf32> to vector<4x1xf32>
    %95 = arith.maximumf %94, %84 : vector<4x1xf32>
    %96 = arith.subf %84, %95 : vector<4x1xf32>
    %97 = math.exp %96 : vector<4x1xf32>
    %98 = vector.broadcast %95 : vector<4x1xf32> to vector<4x16xf32>
    %99 = arith.subf %92, %98 : vector<4x16xf32>
    %100 = math.exp %99 : vector<4x16xf32>
    %101 = arith.mulf %100, %86 : vector<4x16xf32>
    %cst_47 = arith.constant dense<0.000000e+00> : vector<4xf32>
    %102 = vector.multi_reduction <add>, %101, %cst_47 [1] : vector<4x16xf32> to vector<4xf32>
    %103 = vector.shape_cast %102 : vector<4xf32> to vector<4x1xf32>
    %104 = arith.addf %97, %103 : vector<4x1xf32>
    %105 = vector.broadcast %97 : vector<4x1xf32> to vector<4x128xf32>
    %106 = arith.mulf %105, %72 : vector<4x128xf32>
    %cst_48 = arith.constant dense<0.000000e+00> : vector<4x128xf32>
    %107 = tpu.matmul %101, %79, %cst_48 {dimension_numbers = #tpu.dot_dimension_numbers<[1], [0], [0], [1], [0, 0, 1, 1], [], []>} : vector<4x16xf32>, vector<16x128xf32>, vector<4x128xf32> -> vector<4x128xf32>
    %108 = arith.addf %106, %107 : vector<4x128xf32>
    %109 = vector.broadcast %104 : vector<4x1xf32> to vector<4x128xf32>
    %110 = arith.divf %108, %109 : vector<4x128xf32>
    %c0_49 = arith.constant 0 : index
    %c0_50 = arith.constant 0 : index
    %111 = vector.load %arg16[%c0_49, %c0_50] : memref<128x128xf32, #tpu.memory_space<vmem>>, vector<128x128xf32>
    %cst_51 = arith.constant dense<0.000000e+00> : vector<4x128xf32>
    %112 = tpu.matmul %110, %111, %cst_51 {dimension_numbers = #tpu.dot_dimension_numbers<[1], [0], [0], [1], [0, 0, 1, 1], [], []>} : vector<4x128xf32>, vector<128x128xf32>, vector<4x128xf32> -> vector<4x128xf32>
    %c0_52 = arith.constant 0 : index
    %c0_53 = arith.constant 0 : index
    %113 = vector.load %arg17[%c0_52, %c0_53] : memref<1x128xf32, #tpu.memory_space<vmem>>, vector<1x128xf32>
    %114 = vector.broadcast %113 : vector<1x128xf32> to vector<4x128xf32>
    %115 = arith.addf %112, %114 : vector<4x128xf32>
    %c0_54 = arith.constant 0 : index
    %c0_55 = arith.constant 0 : index
    %116 = vector.load %arg18[%c0_54, %c0_55] : memref<128x32xf32, #tpu.memory_space<vmem>>, vector<128x32xf32>
    %cst_56 = arith.constant dense<0.000000e+00> : vector<4x32xf32>
    %117 = tpu.matmul %115, %116, %cst_56 {dimension_numbers = #tpu.dot_dimension_numbers<[1], [0], [0], [1], [0, 0, 1, 1], [], []>} : vector<4x128xf32>, vector<128x32xf32>, vector<4x32xf32> -> vector<4x32xf32>
    %c0_57 = arith.constant 0 : index
    %c0_58 = arith.constant 0 : index
    %118 = vector.load %arg19[%c0_57, %c0_58] : memref<1x32xf32, #tpu.memory_space<vmem>>, vector<1x32xf32>
    %119 = vector.broadcast %118 : vector<1x32xf32> to vector<4x32xf32>
    %120 = arith.addf %117, %119 : vector<4x32xf32>
    %c0_59 = arith.constant 0 : index
    %c0_60 = arith.constant 0 : index
    %121 = vector.load %arg20[%c0_59, %c0_60] : memref<4x32xf32, #tpu.memory_space<vmem>>, vector<4x32xf32>
    tpu.vector_store %arg20[%c0_59, %c0_60], %120 {strides = array<i32>} : memref<4x32xf32, #tpu.memory_space<vmem>>, vector<4x32xf32>,
    return
  }
  func.func @transform_0(%arg0: i32) -> (i32, i32) {
    %c0_i32 = arith.constant 0 : i32
    %c0_i32_0 = arith.constant 0 : i32
    %c0_i32_1 = arith.constant 0 : i32
    return %c0_i32, %c0_i32_0 : i32, i32
  }
  func.func @transform_1(%arg0: i32) -> (i32, i32) {
    %c0_i32 = arith.constant 0 : i32
    %c0_i32_0 = arith.constant 0 : i32
    %c0_i32_1 = arith.constant 0 : i32
    return %c0_i32, %c0_i32_0 : i32, i32
  }
  func.func @transform_2(%arg0: i32) -> (i32, i32) {
    %c0_i32 = arith.constant 0 : i32
    %c0_i32_0 = arith.constant 0 : i32
    %c0_i32_1 = arith.constant 0 : i32
    return %c0_i32, %c0_i32_0 : i32, i32
  }
  func.func @transform_3(%arg0: i32) -> (i32, i32) {
    %c0_i32 = arith.constant 0 : i32
    %c0_i32_0 = arith.constant 0 : i32
    %c0_i32_1 = arith.constant 0 : i32
    return %c0_i32, %c0_i32_0 : i32, i32
  }
  func.func @transform_4(%arg0: i32) -> (i32, i32) {
    %c0_i32 = arith.constant 0 : i32
    %c0_i32_0 = arith.constant 0 : i32
    %c0_i32_1 = arith.constant 0 : i32
    return %c0_i32, %c0_i32_0 : i32, i32
  }
  func.func @transform_5(%arg0: i32) -> (i32, i32) {
    %c0_i32 = arith.constant 0 : i32
    %c0_i32_0 = arith.constant 0 : i32
    %c0_i32_1 = arith.constant 0 : i32
    return %c0_i32, %c0_i32_0 : i32, i32
  }
  func.func @transform_6(%arg0: i32) -> (i32, i32) {
    %c0_i32 = arith.constant 0 : i32
    %c0_i32_0 = arith.constant 0 : i32
    %c0_i32_1 = arith.constant 0 : i32
    return %c0_i32, %c0_i32_0 : i32, i32
  }
  func.func @transform_7(%arg0: i32) -> (i32, i32) {
    %c0_i32 = arith.constant 0 : i32
    %c0_i32_0 = arith.constant 0 : i32
    %c0_i32_1 = arith.constant 0 : i32
    return %c0_i32, %c0_i32_0 : i32, i32
  }
  func.func @transform_8(%arg0: i32) -> (i32, i32) {
    %c0_i32 = arith.constant 0 : i32
    %c0_i32_0 = arith.constant 0 : i32
    %c0_i32_1 = arith.constant 0 : i32
    return %c0_i32, %c0_i32_0 : i32, i32
  }
  func.func @transform_9(%arg0: i32) -> (i32, i32) {
    %c0_i32 = arith.constant 0 : i32
    %c0_i32_0 = arith.constant 0 : i32
    %c0_i32_1 = arith.constant 0 : i32
    return %c0_i32, %c0_i32_0 : i32, i32
  }
  func.func @transform_10(%arg0: i32) -> (i32, i32) {
    %c0_i32 = arith.constant 0 : i32
    %c0_i32_0 = arith.constant 0 : i32
    %c0_i32_1 = arith.constant 0 : i32
    return %c0_i32, %c0_i32_0 : i32, i32
  }
  func.func @transform_11(%arg0: i32) -> (i32, i32) {
    %c0_i32 = arith.constant 0 : i32
    %c0_i32_0 = arith.constant 0 : i32
    %c0_i32_1 = arith.constant 0 : i32
    return %c0_i32, %c0_i32_0 : i32, i32
  }
  func.func @transform_12(%arg0: i32) -> (i32, i32) {
    %c0_i32 = arith.constant 0 : i32
    %c0_i32_0 = arith.constant 0 : i32
    %c0_i32_1 = arith.constant 0 : i32
    return %c0_i32, %c0_i32_0 : i32, i32
  }
  func.func @transform_13(%arg0: i32) -> (i32, i32) {
    %c0_i32 = arith.constant 0 : i32
    %c0_i32_0 = arith.constant 0 : i32
    %c0_i32_1 = arith.constant 0 : i32
    return %c0_i32, %c0_i32_0 : i32, i32
  }
  func.func @transform_14(%arg0: i32) -> (i32, i32) {
    %c0_i32 = arith.constant 0 : i32
    %c0_i32_0 = arith.constant 0 : i32
    %c0_i32_1 = arith.constant 0 : i32
    return %c0_i32, %c0_i32_0 : i32, i32
  }
  func.func @transform_15(%arg0: i32) -> (i32, i32) {
    %c0_i32 = arith.constant 0 : i32
    %c0_i32_0 = arith.constant 0 : i32
    %c0_i32_1 = arith.constant 0 : i32
    return %c0_i32, %c0_i32_0 : i32, i32
  }
  func.func @transform_16(%arg0: i32) -> (i32, i32) {
    %c0_i32 = arith.constant 0 : i32
    %c0_i32_0 = arith.constant 0 : i32
    %c0_i32_1 = arith.constant 0 : i32
    return %c0_i32, %c0_i32_0 : i32, i32
  }
  func.func @transform_17(%arg0: i32) -> (i32, i32) {
    %c0_i32 = arith.constant 0 : i32
    %c0_i32_0 = arith.constant 0 : i32
    %c0_i32_1 = arith.constant 0 : i32
    return %c0_i32, %c0_i32_0 : i32, i32
  }
  func.func @transform_18(%arg0: i32) -> (i32, i32) {
    %c0_i32 = arith.constant 0 : i32
    %c0_i32_0 = arith.constant 0 : i32
    %c0_i32_1 = arith.constant 0 : i32
    return %c0_i32, %c0_i32_0 : i32, i32
  }
  func.func @transform_19(%arg0: i32) -> (i32, i32) {
    %c0_i32 = arith.constant 0 : i32
    %c0_i32_0 = arith.constant 0 : i32
    %c0_i32_1 = arith.constant 0 : i32
    return %c0_i32, %c0_i32_0 : i32, i32
  }
  func.func @transform_20(%arg0: i32) -> (i32, i32) {
    %c0_i32 = arith.constant 0 : i32
    %c0_i32_0 = arith.constant 0 : i32
    %c0_i32_1 = arith.constant 0 : i32
    return %c0_i32, %c0_i32_0 : i32, i32
  }
  func.func @transform_21(%arg0: i32) -> (i32, i32) {
    %c0_i32 = arith.constant 0 : i32
    %c0_i32_0 = arith.constant 0 : i32
    %c0_i32_1 = arith.constant 0 : i32
    return %c0_i32, %c0_i32_0 : i32, i32
  }
}

</mosaic_0001>

<llo_original>
// kernel: sattention_pallas.1
$region0: #{sattention_pallas.1}
  #allocation0 [shape = 'u32[]', space=smem, size = 0x4, offset = 0x4, fixed_abs, tag = 'smem constant byte address 0x4 - core index']
  #allocation1 [shape = 'u32[144,128]{1,0:T(1,128)}', space=vmem, size = 0x12000, scoped, tag = 'internal scratch']
  %s0 = inlined_call_operand.vmem [shape: f32[16,2], index: 0, kind: input, shape index: {}]
  %s1 = inlined_call_operand.hbm [shape: f32[4,128], index: 1, kind: input, shape index: {}]
  %s2 = inlined_call_operand.vmem [shape: f32[16,128], index: 2, kind: input, shape index: {}, may-alias: {2,20}]
  %s3 = inlined_call_operand.vmem [shape: f32[16,128], index: 3, kind: input, shape index: {}, may-alias: {3,21}]
  %s4 = inlined_call_operand.vmem [shape: f32[16,1], index: 4, kind: input, shape index: {}]
  %s5 = inlined_call_operand.vmem [shape: f32[4,16], index: 5, kind: input, shape index: {}]
  %s6 = inlined_call_operand.vmem [shape: f32[2,32], index: 6, kind: input, shape index: {}]
  %s7 = inlined_call_operand.hbm [shape: f32[1,32], index: 7, kind: input, shape index: {}]
  %s8 = inlined_call_operand.hbm [shape: f32[32,512], index: 8, kind: input, shape index: {}]
  %s9 = inlined_call_operand.hbm [shape: f32[128,512], index: 9, kind: input, shape index: {}]
  %s10 = inlined_call_operand.vmem [shape: f32[1,512], index: 10, kind: input, shape index: {}]
  %s11 = inlined_call_operand.hbm [shape: f32[128,384], index: 11, kind: input, shape index: {}]
  %s12 = inlined_call_operand.hbm [shape: f32[1,384], index: 12, kind: input, shape index: {}]
  %s13 = inlined_call_operand.vmem [shape: f32[128,256], index: 13, kind: input, shape index: {}]
  %s14 = inlined_call_operand.hbm [shape: f32[1,256], index: 14, kind: input, shape index: {}]
  %s15 = inlined_call_operand.hbm [shape: f32[128,128], index: 15, kind: input, shape index: {}]
  %s16 = inlined_call_operand.hbm [shape: f32[1,128], index: 16, kind: input, shape index: {}]
  %s17 = inlined_call_operand.vmem [shape: f32[128,32], index: 17, kind: input, shape index: {}]
  %s18 = inlined_call_operand.hbm [shape: f32[1,32], index: 18, kind: input, shape index: {}]
  %s19 = inlined_call_operand.hbm [shape: f32[4,32], index: 19, kind: output, shape index: {0}]
  %s20 = inlined_call_operand.vmem [shape: f32[16,128], index: 20, kind: output, shape index: {1}, may-alias: {2,20}]
  %s21 = inlined_call_operand.vmem [shape: f32[16,128], index: 21, kind: output, shape index: {2}, may-alias: {3,21}]
  %22 = xla_tuple %s19, %s20, %s21
  %s23 = sld [smem:[#allocation0]]
  $region142: #{sattention_pallas.1} parent=0
    _
  %s25 = ssub.s32 1, %s23
  %s26 = scalar_select 0, %s25, %s23
  $region1: #{sattention_pallas.1} parent=0
    #allocation2 [shape = 'u8[2048]{0}', space=vmem, size = 0x800, scoped, tag = 'input window, operand 1, single buffered']
    #allocation3 [shape = 's32[1]{0}', space=sflag, size = 0x4, scoped, tag = 'scoped memory for sattention_pallas.1']
    #allocation4 [shape = 's32[1]{0}', space=sflag, size = 0x4, scoped, tag = 'scoped memory for sattention_pallas.1']
    #allocation5 [shape = 'u8[512]{0}', space=vmem, size = 0x400, scoped, tag = 'input window, operand 7, single buffered']
    #allocation6 [shape = 's32[1]{0}', space=sflag, size = 0x4, scoped, tag = 'scoped memory for sattention_pallas.1']
    #allocation7 [shape = 'u8[65536]{0}', space=vmem, size = 0x10000, scoped, tag = 'input window, operand 8, single buffered']
    #allocation8 [shape = 'u8[262144]{0}', space=vmem, size = 0x40000, scoped, tag = 'input window, operand 9, single buffered']
    #allocation9 [shape = 's32[1]{0}', space=sflag, size = 0x4, scoped, tag = 'scoped memory for sattention_pallas.1']
    #allocation10 [shape = 'u8[196608]{0}', space=vmem, size = 0x30000, scoped, tag = 'input window, operand 11, single buffered']
    #allocation11 [shape = 'u8[1536]{0}', space=vmem, size = 0x800, scoped, tag = 'input window, operand 12, single buffered']
    #allocation12 [shape = 's32[1]{0}', space=sflag, size = 0x4, scoped, tag = 'scoped memory for sattention_pallas.1']
    #allocation13 [shape = 'u8[1024]{0}', space=vmem, size = 0x400, scoped, tag = 'input window, operand 14, single buffered']
    #allocation14 [shape = 'u8[65536]{0}', space=vmem, size = 0x10000, scoped, tag = 'input window, operand 15, single buffered']
    #allocation15 [shape = 's32[1]{0}', space=sflag, size = 0x4, scoped, tag = 'scoped memory for sattention_pallas.1']
    #allocation16 [shape = 'u8[512]{0}', space=vmem, size = 0x400, scoped, tag = 'input window, operand 16, single buffered']
    #allocation17 [shape = 'u8[512]{0}', space=vmem, size = 0x400, scoped, tag = 'input window, operand 18, single buffered']
    #allocation18 [shape = 's32[1]{0}', space=sflag, size = 0x4, scoped, tag = 'scoped memory for sattention_pallas.1']
    #allocation19 [shape = 'u8[2048]{0}', space=vmem, size = 0x800, scoped, tag = 'output window, operand 0, single buffered']
    %27 = vsyncpa [#allocation3], 0
    %28 = vsyncpa [#allocation6], 0
    %29 = vsyncpa [#allocation9], 0
    %30 = vsyncpa [#allocation12], 0
    %31 = vsyncpa [#allocation15], 0
    %32 = vsyncpa [#allocation18], 0
    %33 = vsyncpa [#allocation4], 0
    // Predicated region
    $region2: #{sattention_pallas.1} parent=1 // pred_check
      _
    $region3: #{sattention_pallas.1} parent=1 // pred_check_branch
      %35 = sbr.rel (0) target = $region5
    $region4: #{sattention_pallas.1} parent=1 // pred_region
      _
    $region5: #{sattention_pallas.1} parent=1 // pred_fallthru
      _
    // Predicated region
    $region6: #{sattention_pallas.1} parent=1 // pred_check
      _
    $region7: #{sattention_pallas.1} parent=1 // pred_check_branch
      %37 = sbr.rel (0) target = $region9
    $region8: #{sattention_pallas.1} parent=1 // pred_region
      %s39 = ssub.s32 64, 64
      %40 = vsyncadd [#allocation3], %s39
      %s42 = sshll.u32 [#allocation2], 4
      %s43 = int_to_ptr.vmem [resolvable:$true] %s42
      %45 = dma.hbm_to_vmem [thread:$0]  %s1, 64, %s43, [#allocation3]
    $region9: #{sattention_pallas.1} parent=1 // pred_fallthru
      _
    // Predicated region
    $region10: #{sattention_pallas.1} parent=1 // pred_check
      _
    $region11: #{sattention_pallas.1} parent=1 // pred_check_branch
      %47 = sbr.rel (0) target = $region13
    $region12: #{sattention_pallas.1} parent=1 // pred_region
      _
    $region13: #{sattention_pallas.1} parent=1 // pred_fallthru
      _
    // Predicated region
    $region14: #{sattention_pallas.1} parent=1 // pred_check
      _
    $region15: #{sattention_pallas.1} parent=1 // pred_check_branch
      %49 = sbr.rel (0) target = $region17
    $region16: #{sattention_pallas.1} parent=1 // pred_region
      _
    $region17: #{sattention_pallas.1} parent=1 // pred_fallthru
      _
    // Predicated region
    $region18: #{sattention_pallas.1} parent=1 // pred_check
      _
    $region19: #{sattention_pallas.1} parent=1 // pred_check_branch
      %51 = sbr.rel (0) target = $region21
    $region20: #{sattention_pallas.1} parent=1 // pred_region
      _
    $region21: #{sattention_pallas.1} parent=1 // pred_fallthru
      _
    // Predicated region
    $region22: #{sattention_pallas.1} parent=1 // pred_check
      _
    $region23: #{sattention_pallas.1} parent=1 // pred_check_branch
      %53 = sbr.rel (0) target = $region25
    $region24: #{sattention_pallas.1} parent=1 // pred_region
      _
    $region25: #{sattention_pallas.1} parent=1 // pred_fallthru
      _
    // Predicated region
    $region26: #{sattention_pallas.1} parent=1 // pred_check
      _
    $region27: #{sattention_pallas.1} parent=1 // pred_check_branch
      %55 = sbr.rel (0) target = $region29
    $region28: #{sattention_pallas.1} parent=1 // pred_region
      _
    $region29: #{sattention_pallas.1} parent=1 // pred_fallthru
      _
    // Predicated region
    $region30: #{sattention_pallas.1} parent=1 // pred_check
      _
    $region31: #{sattention_pallas.1} parent=1 // pred_check_branch
      %57 = sbr.rel (0) target = $region33
    $region32: #{sattention_pallas.1} parent=1 // pred_region
      %s59 = ssub.s32 16, 16
      %60 = vsyncadd [#allocation6], %s59
      %s62 = sshll.u32 [#allocation5], 4
      %s63 = int_to_ptr.vmem [resolvable:$true] %s62
      %65 = dma.hbm_to_vmem [thread:$0]  %s7, 16, %s63, [#allocation6]
    $region33: #{sattention_pallas.1} parent=1 // pred_fallthru
      _
    // Predicated region
    $region34: #{sattention_pallas.1} parent=1 // pred_check
      _
    $region35: #{sattention_pallas.1} parent=1 // pred_check_branch
      %67 = sbr.rel (0) target = $region37
    $region36: #{sattention_pallas.1} parent=1 // pred_region
      %s69 = ssub.s32 2048, 2048
      %70 = vsyncadd [#allocation6], %s69
      %s71 = sshll.u32 [#allocation7], 4
      %s72 = int_to_ptr.vmem [resolvable:$true] %s71
      %77 = dma.hbm_to_vmem [thread:$0]  %s8, 2048, %s72, [#allocation6], 512, 512, 32
    $region37: #{sattention_pallas.1} parent=1 // pred_fallthru
      _
    // Predicated region
    $region38: #{sattention_pallas.1} parent=1 // pred_check
      _
    $region39: #{sattention_pallas.1} parent=1 // pred_check_branch
      %79 = sbr.rel (0) target = $region41
    $region40: #{sattention_pallas.1} parent=1 // pred_region
      %s81 = ssub.s32 8192, 8192
      %82 = vsyncadd [#allocation9], %s81
      %s83 = sshll.u32 [#allocation8], 4
      %s84 = int_to_ptr.vmem [resolvable:$true] %s83
      %89 = dma.hbm_to_vmem [thread:$0]  %s9, 8192, %s84, [#allocation9], 512, 512, 32
    $region41: #{sattention_pallas.1} parent=1 // pred_fallthru
      _
    // Predicated region
    $region42: #{sattention_pallas.1} parent=1 // pred_check
      _
    $region43: #{sattention_pallas.1} parent=1 // pred_check_branch
      %91 = sbr.rel (0) target = $region45
    $region44: #{sattention_pallas.1} parent=1 // pred_region
      _
    $region45: #{sattention_pallas.1} parent=1 // pred_fallthru
      _
    // Predicated region
    $region46: #{sattention_pallas.1} parent=1 // pred_check
      _
    $region47: #{sattention_pallas.1} parent=1 // pred_check_branch
      %93 = sbr.rel (0) target = $region49
    $region48: #{sattention_pallas.1} parent=1 // pred_region
      %s95 = ssub.s32 6144, 6144
      %96 = vsyncadd [#allocation9], %s95
      %s97 = sshll.u32 [#allocation10], 4
      %s98 = int_to_ptr.vmem [resolvable:$true] %s97
      %103 = dma.hbm_to_vmem [thread:$0]  %s11, 6144, %s98, [#allocation9], 384, 384, 24
    $region49: #{sattention_pallas.1} parent=1 // pred_fallthru
      _
    // Predicated region
    $region50: #{sattention_pallas.1} parent=1 // pred_check
      _
    $region51: #{sattention_pallas.1} parent=1 // pred_check_branch
      %105 = sbr.rel (0) target = $region53
    $region52: #{sattention_pallas.1} parent=1 // pred_region
      %s107 = ssub.s32 48, 48
      %108 = vsyncadd [#allocation12], %s107
      %s110 = sshll.u32 [#allocation11], 4
      %s111 = int_to_ptr.vmem [resolvable:$true] %s110
      %113 = dma.hbm_to_vmem [thread:$0]  %s12, 48, %s111, [#allocation12]
    $region53: #{sattention_pallas.1} parent=1 // pred_fallthru
      _
    // Predicated region
    $region54: #{sattention_pallas.1} parent=1 // pred_check
      _
    $region55: #{sattention_pallas.1} parent=1 // pred_check_branch
      %115 = sbr.rel (0) target = $region57
    $region56: #{sattention_pallas.1} parent=1 // pred_region
      _
    $region57: #{sattention_pallas.1} parent=1 // pred_fallthru
      _
    // Predicated region
    $region58: #{sattention_pallas.1} parent=1 // pred_check
      _
    $region59: #{sattention_pallas.1} parent=1 // pred_check_branch
      %117 = sbr.rel (0) target = $region61
    $region60: #{sattention_pallas.1} parent=1 // pred_region
      %s119 = ssub.s32 32, 32
      %120 = vsyncadd [#allocation12], %s119
      %s122 = sshll.u32 [#allocation13], 4
      %s123 = int_to_ptr.vmem [resolvable:$true] %s122
      %125 = dma.hbm_to_vmem [thread:$0]  %s14, 32, %s123, [#allocation12]
    $region61: #{sattention_pallas.1} parent=1 // pred_fallthru
      _
    // Predicated region
    $region62: #{sattention_pallas.1} parent=1 // pred_check
      _
    $region63: #{sattention_pallas.1} parent=1 // pred_check_branch
      %127 = sbr.rel (0) target = $region65
    $region64: #{sattention_pallas.1} parent=1 // pred_region
      %s129 = ssub.s32 2048, 2048
      %130 = vsyncadd [#allocation15], %s129
      %s131 = sshll.u32 [#allocation14], 4
      %s132 = int_to_ptr.vmem [resolvable:$true] %s131
      %137 = dma.hbm_to_vmem [thread:$0]  %s15, 2048, %s132, [#allocation15], 128, 128, 8
    $region65: #{sattention_pallas.1} parent=1 // pred_fallthru
      _
    // Predicated region
    $region66: #{sattention_pallas.1} parent=1 // pred_check
      _
    $region67: #{sattention_pallas.1} parent=1 // pred_check_branch
      %139 = sbr.rel (0) target = $region69
    $region68: #{sattention_pallas.1} parent=1 // pred_region
      %s141 = ssub.s32 16, 16
      %142 = vsyncadd [#allocation15], %s141
      %s144 = sshll.u32 [#allocation16], 4
      %s145 = int_to_ptr.vmem [resolvable:$true] %s144
      %147 = dma.hbm_to_vmem [thread:$0]  %s16, 16, %s145, [#allocation15]
    $region69: #{sattention_pallas.1} parent=1 // pred_fallthru
      _
    // Predicated region
    $region70: #{sattention_pallas.1} parent=1 // pred_check
      _
    $region71: #{sattention_pallas.1} parent=1 // pred_check_branch
      %149 = sbr.rel (0) target = $region73
    $region72: #{sattention_pallas.1} parent=1 // pred_region
      _
    $region73: #{sattention_pallas.1} parent=1 // pred_fallthru
      _
    // Predicated region
    $region74: #{sattention_pallas.1} parent=1 // pred_check
      _
    $region75: #{sattention_pallas.1} parent=1 // pred_check_branch
      %151 = sbr.rel (0) target = $region77
    $region76: #{sattention_pallas.1} parent=1 // pred_region
      %s153 = ssub.s32 16, 16
      %154 = vsyncadd [#allocation18], %s153
      %s156 = sshll.u32 [#allocation17], 4
      %s157 = int_to_ptr.vmem [resolvable:$true] %s156
      %159 = dma.hbm_to_vmem [thread:$0]  %s18, 16, %s157, [#allocation18]
    $region77: #{sattention_pallas.1} parent=1 // pred_fallthru
      _
    // Predicated region
    $region78: #{sattention_pallas.1} parent=1 // pred_check
      _
    $region79: #{sattention_pallas.1} parent=1 // pred_check_branch
      %161 = sbr.rel (0) target = $region81
    $region80: #{sattention_pallas.1} parent=1 // pred_region
      %162 = dma.done [#allocation3], 64
    $region81: #{sattention_pallas.1} parent=1 // pred_fallthru
      _
    // Predicated region
    $region82: #{sattention_pallas.1} parent=1 // pred_check
      _
    $region83: #{sattention_pallas.1} parent=1 // pred_check_branch
      %164 = sbr.rel (0) target = $region85
    $region84: #{sattention_pallas.1} parent=1 // pred_region
      %165 = dma.done [#allocation6], 16
    $region85: #{sattention_pallas.1} parent=1 // pred_fallthru
      _
    // Predicated region
    $region86: #{sattention_pallas.1} parent=1 // pred_check
      _
    $region87: #{sattention_pallas.1} parent=1 // pred_check_branch
      %167 = sbr.rel (0) target = $region89
    $region88: #{sattention_pallas.1} parent=1 // pred_region
      %168 = dma.done [#allocation6], 2048
    $region89: #{sattention_pallas.1} parent=1 // pred_fallthru
      _
    // Predicated region
    $region90: #{sattention_pallas.1} parent=1 // pred_check
      _
    $region91: #{sattention_pallas.1} parent=1 // pred_check_branch
      %170 = sbr.rel (0) target = $region93
    $region92: #{sattention_pallas.1} parent=1 // pred_region
      %171 = dma.done [#allocation9], 8192
    $region93: #{sattention_pallas.1} parent=1 // pred_fallthru
      _
    // Predicated region
    $region94: #{sattention_pallas.1} parent=1 // pred_check
      _
    $region95: #{sattention_pallas.1} parent=1 // pred_check_branch
      %173 = sbr.rel (0) target = $region97
    $region96: #{sattention_pallas.1} parent=1 // pred_region
      %174 = dma.done [#allocation9], 6144
    $region97: #{sattention_pallas.1} parent=1 // pred_fallthru
      _
    // Predicated region
    $region98: #{sattention_pallas.1} parent=1 // pred_check
      _
    $region99: #{sattention_pallas.1} parent=1 // pred_check_branch
      %176 = sbr.rel (0) target = $region101
    $region100: #{sattention_pallas.1} parent=1 // pred_region
      %177 = dma.done [#allocation12], 48
    $region101: #{sattention_pallas.1} parent=1 // pred_fallthru
      _
    // Predicated region
    $region102: #{sattention_pallas.1} parent=1 // pred_check
      _
    $region103: #{sattention_pallas.1} parent=1 // pred_check_branch
      %179 = sbr.rel (0) target = $region105
    $region104: #{sattention_pallas.1} parent=1 // pred_region
      %180 = dma.done [#allocation12], 32
    $region105: #{sattention_pallas.1} parent=1 // pred_fallthru
      _
    // Predicated region
    $region106: #{sattention_pallas.1} parent=1 // pred_check
      _
    $region107: #{sattention_pallas.1} parent=1 // pred_check_branch
      %182 = sbr.rel (0) target = $region109
    $region108: #{sattention_pallas.1} parent=1 // pred_region
      %183 = dma.done [#allocation15], 2048
    $region109: #{sattention_pallas.1} parent=1 // pred_fallthru
      _
    // Predicated region
    $region110: #{sattention_pallas.1} parent=1 // pred_check
      _
    $region111: #{sattention_pallas.1} parent=1 // pred_check_branch
      %185 = sbr.rel (0) target = $region113
    $region112: #{sattention_pallas.1} parent=1 // pred_region
      %186 = dma.done [#allocation15], 16
    $region113: #{sattention_pallas.1} parent=1 // pred_fallthru
      _
    // Predicated region
    $region114: #{sattention_pallas.1} parent=1 // pred_check
      _
    $region115: #{sattention_pallas.1} parent=1 // pred_check_branch
      %188 = sbr.rel (0) target = $region117
    $region116: #{sattention_pallas.1} parent=1 // pred_region
      %189 = dma.done [#allocation18], 16
    $region117: #{sattention_pallas.1} parent=1 // pred_fallthru
      _
    %v190 = vld [vmem:[%s0] sm:$0xff]
    %v191 = vld [vmem:[%s0 + $0x8] sm:$0xff]
    %v192 = vld [vmem:[%s6] sm:$0x3]
    %194 = vset.pattern.permute.xlu0 0
    %195 = vperm.xlu0 %194, %v190
    %v196 = vpop.permute.xlu0 %195
    %199 = vset.pattern.permute.xlu0 0
    %200 = vperm.xlu0 %199, %v191
    %v201 = vpop.permute.xlu0 %200
    %v203 = vlaneseq
    %v204 = vshrl.u32 %v203, 7
    %v205 = vsub.s32 0, %v204
    %v206 = vrot.slane %v192, %v205
    %v207 = vmul.f32 %v196, %v206
    %v208 = vmul.f32 %v201, %v206
    %209 = vset.pattern.permute.xlu0 1
    %210 = vperm.xlu0 %209, %v190
    %v211 = vpop.permute.xlu0 %210
    %213 = vset.pattern.permute.xlu0 1
    %214 = vperm.xlu0 %213, %v191
    %v215 = vpop.permute.xlu0 %214
    %v217 = vlaneseq
    %v218 = vshrl.u32 %v217, 7
    %v219 = vsub.s32 1, %v218
    %v220 = vrot.slane %v192, %v219
    %v221 = vmul.f32 %v211, %v220
    %v222 = vmul.f32 %v215, %v220
    %v223 = vadd.f32 %v207, %v221
    %v224 = vadd.f32 %v208, %v222
    %v225 = vld [vmem:[#allocation5] sm:$0x1]
    %v227 = vlaneseq
    %v228 = vshrl.u32 %v227, 7
    %v229 = vsub.s32 0, %v228
    %v230 = vrot.slane %v225, %v229
    %v232 = vadd.f32 %v223, %v230
    %v233 = vadd.f32 %v224, %v230
    %v234 = vmax.f32 %v232, 0.0
    %v235 = vmax.f32 %v233, 0.0
    %v236 = vld [vmem:[%s2] sm:$0xff]
    %v237 = vld [vmem:[%s2 + $0x8] sm:$0xff]
    %v238 = vld [vmem:[%s3] sm:$0xff]
    %v239 = vld [vmem:[%s3 + $0x8] sm:$0xff]
    %v240 = vld [vmem:[#allocation7] sm:$0xff]
    %v241 = vld [vmem:[#allocation7 + $0x8] sm:$0xff]
    %v242 = vld [vmem:[#allocation7 + $0x10] sm:$0xff]
    %v243 = vld [vmem:[#allocation7 + $0x18] sm:$0xff]
    %v244 = vld [vmem:[#allocation7 + $0x20] sm:$0xff]
    %v245 = vld [vmem:[#allocation7 + $0x28] sm:$0xff]
    %v246 = vld [vmem:[#allocation7 + $0x30] sm:$0xff]
    %v247 = vld [vmem:[#allocation7 + $0x38] sm:$0xff]
    %v248 = vld [vmem:[#allocation7 + $0x40] sm:$0xff]
    %v249 = vld [vmem:[#allocation7 + $0x48] sm:$0xff]
    %v250 = vld [vmem:[#allocation7 + $0x50] sm:$0xff]
    %v251 = vld [vmem:[#allocation7 + $0x58] sm:$0xff]
    %v252 = vld [vmem:[#allocation7 + $0x60] sm:$0xff]
    %v253 = vld [vmem:[#allocation7 + $0x68] sm:$0xff]
    %v254 = vld [vmem:[#allocation7 + $0x70] sm:$0xff]
    %v255 = vld [vmem:[#allocation7 + $0x78] sm:$0xff]
    %v256 = vld [vmem:[#allocation8] sm:$0xff]
    %v257 = vld [vmem:[#allocation8 + $0x8] sm:$0xff]
    %v258 = vld [vmem:[#allocation8 + $0x10] sm:$0xff]
    %v259 = vld [vmem:[#allocation8 + $0x18] sm:$0xff]
    %v260 = vld [vmem:[#allocation8 + $0x20] sm:$0xff]
    %v261 = vld [vmem:[#allocation8 + $0x28] sm:$0xff]
    %v262 = vld [vmem:[#allocation8 + $0x30] sm:$0xff]
    %v263 = vld [vmem:[#allocation8 + $0x38] sm:$0xff]
    %v264 = vld [vmem:[#allocation8 + $0x40] sm:$0xff]
    %v265 = vld [vmem:[#allocation8 + $0x48] sm:$0xff]
    %v266 = vld [vmem:[#allocation8 + $0x50] sm:$0xff]
    %v267 = vld [vmem:[#allocation8 + $0x58] sm:$0xff]
    %v268 = vld [vmem:[#allocation8 + $0x60] sm:$0xff]
    %v269 = vld [vmem:[#allocation8 + $0x68] sm:$0xff]
    %v270 = vld [vmem:[#allocation8 + $0x70] sm:$0xff]
    %v271 = vld [vmem:[#allocation8 + $0x78] sm:$0xff]
    %v272 = vld [vmem:[#allocation8 + $0x80] sm:$0xff]
    %v273 = vld [vmem:[#allocation8 + $0x88] sm:$0xff]
    %v274 = vld [vmem:[#allocation8 + $0x90] sm:$0xff]
    %v275 = vld [vmem:[#allocation8 + $0x98] sm:$0xff]
    %v276 = vld [vmem:[#allocation8 + $0xa0] sm:$0xff]
    %v277 = vld [vmem:[#allocation8 + $0xa8] sm:$0xff]
    %v278 = vld [vmem:[#allocation8 + $0xb0] sm:$0xff]
    %v279 = vld [vmem:[#allocation8 + $0xb8] sm:$0xff]
    %v280 = vld [vmem:[#allocation8 + $0xc0] sm:$0xff]
    %v281 = vld [vmem:[#allocation8 + $0xc8] sm:$0xff]
    %v282 = vld [vmem:[#allocation8 + $0xd0] sm:$0xff]
    %v283 = vld [vmem:[#allocation8 + $0xd8] sm:$0xff]
    %v284 = vld [vmem:[#allocation8 + $0xe0] sm:$0xff]
    %v285 = vld [vmem:[#allocation8 + $0xe8] sm:$0xff]
    %v286 = vld [vmem:[#allocation8 + $0xf0] sm:$0xff]
    %v287 = vld [vmem:[#allocation8 + $0xf8] sm:$0xff]
    %v288 = vld [vmem:[#allocation8 + $0x100] sm:$0xff]
    %v289 = vld [vmem:[#allocation8 + $0x108] sm:$0xff]
    %v290 = vld [vmem:[#allocation8 + $0x110] sm:$0xff]
    %v291 = vld [vmem:[#allocation8 + $0x118] sm:$0xff]
    %v292 = vld [vmem:[#allocation8 + $0x120] sm:$0xff]
    %v293 = vld [vmem:[#allocation8 + $0x128] sm:$0xff]
    %v294 = vld [vmem:[#allocation8 + $0x130] sm:$0xff]
    %v295 = vld [vmem:[#allocation8 + $0x138] sm:$0xff]
    %v296 = vld [vmem:[#allocation8 + $0x140] sm:$0xff]
    %v297 = vld [vmem:[#allocation8 + $0x148] sm:$0xff]
    %v298 = vld [vmem:[#allocation8 + $0x150] sm:$0xff]
    %v299 = vld [vmem:[#allocation8 + $0x158] sm:$0xff]
    %v300 = vld [vmem:[#allocation8 + $0x160] sm:$0xff]
    %v301 = vld [vmem:[#allocation8 + $0x168] sm:$0xff]
    %v302 = vld [vmem:[#allocation8 + $0x170] sm:$0xff]
    %v303 = vld [vmem:[#allocation8 + $0x178] sm:$0xff]
    %v304 = vld [vmem:[#allocation8 + $0x180] sm:$0xff]
    %v305 = vld [vmem:[#allocation8 + $0x188] sm:$0xff]
    %v306 = vld [vmem:[#allocation8 + $0x190] sm:$0xff]
    %v307 = vld [vmem:[#allocation8 + $0x198] sm:$0xff]
    %v308 = vld [vmem:[#allocation8 + $0x1a0] sm:$0xff]
    %v309 = vld [vmem:[#allocation8 + $0x1a8] sm:$0xff]
    %v310 = vld [vmem:[#allocation8 + $0x1b0] sm:$0xff]
    %v311 = vld [vmem:[#allocation8 + $0x1b8] sm:$0xff]
    %v312 = vld [vmem:[#allocation8 + $0x1c0] sm:$0xff]
    %v313 = vld [vmem:[#allocation8 + $0x1c8] sm:$0xff]
    %v314 = vld [vmem:[#allocation8 + $0x1d0] sm:$0xff]
    %v315 = vld [vmem:[#allocation8 + $0x1d8] sm:$0xff]
    %v316 = vld [vmem:[#allocation8 + $0x1e0] sm:$0xff]
    %v317 = vld [vmem:[#allocation8 + $0x1e8] sm:$0xff]
    %v318 = vld [vmem:[#allocation8 + $0x1f0] sm:$0xff]
    %v319 = vld [vmem:[#allocation8 + $0x1f8] sm:$0xff]
    %320 = vmatprep.subr.mxu0 %v317
    %321 = vmatpush1.msra.mxu0 %v316
    %322 = vmatprep.subr.mxu0 %v313
    %323 = vmatpush1.msra.mxu0 %v312
    %324 = vmatprep.subr.mxu0 %v309
    %325 = vmatpush1.msra.mxu0 %v308
    %326 = vmatprep.subr.mxu0 %v305
    %327 = vmatpush1.msra.mxu0 %v304
    %328 = vmatprep.subr.mxu0 %v301
    %329 = vmatpush1.msra.mxu0 %v300
    %330 = vmatprep.subr.mxu0 %v297
    %331 = vmatpush1.msra.mxu0 %v296
    %332 = vmatprep.subr.mxu0 %v293
    %333 = vmatpush1.msra.mxu0 %v292
    %334 = vmatprep.subr.mxu0 %v289
    %335 = vmatpush1.msra.mxu0 %v288
    %336 = vmatprep.subr.mxu0 %v285
    %337 = vmatpush1.msra.mxu0 %v284
    %338 = vmatprep.subr.mxu0 %v281
    %339 = vmatpush1.msra.mxu0 %v280
    %340 = vmatprep.subr.mxu0 %v277
    %341 = vmatpush1.msra.mxu0 %v276
    %342 = vmatprep.subr.mxu0 %v273
    %343 = vmatpush1.msra.mxu0 %v272
    %344 = vmatprep.subr.mxu0 %v269
    %345 = vmatpush1.msra.mxu0 %v268
    %346 = vmatprep.subr.mxu0 %v265
    %347 = vmatpush1.msra.mxu0 %v264
    %348 = vmatprep.subr.mxu0 %v261
    %349 = vmatpush1.msra.mxu0 %v260
    %350 = vmatprep.subr.mxu0 %v257
    %351 = vmatpush1.msra.mxu0 %v256
    %352 = vmatprep.subr.mxu0 0.0
    %353 = vmatpush2.msra.mxu0 0.0
    %354 = vmatprep.subr.mxu0 0.0
    %355 = vmatpush2.msra.mxu0 0.0
    %356 = vmatprep.subr.mxu0 0.0
    %357 = vmatpush2.msra.mxu0 0.0
    %358 = vmatprep.subr.mxu0 0.0
    %359 = vmatpush2.msra.mxu0 0.0
    %360 = vmatprep.subr.mxu0 0.0
    %361 = vmatpush2.msra.mxu0 0.0
    %362 = vmatprep.subr.mxu0 0.0
    %363 = vmatpush2.msra.mxu0 0.0
    %364 = vmatprep.subr.mxu0 0.0
    %365 = vmatpush2.msra.mxu0 0.0
    %366 = vmatprep.subr.mxu0 0.0
    %367 = vmatpush2.msra.mxu0 0.0
    %368 = vmatprep.subr.mxu0 0.0
    %369 = vmatpush2.msra.mxu0 0.0
    %370 = vmatprep.subr.mxu0 0.0
    %371 = vmatpush2.msra.mxu0 0.0
    %372 = vmatprep.subr.mxu0 0.0
    %373 = vmatpush2.msra.mxu0 0.0
    %374 = vmatprep.subr.mxu0 0.0
    %375 = vmatpush2.msra.mxu0 0.0
    %376 = vmatprep.subr.mxu0 0.0
    %377 = vmatpush2.msra.mxu0 0.0
    %378 = vmatprep.subr.mxu0 0.0
    %379 = vmatpush2.msra.mxu0 0.0
    %380 = vmatprep.subr.mxu0 0.0
    %381 = vmatpush2.msra.mxu0 0.0
    %382 = vmatprep.subr.mxu0 0.0
    %383 = vmatpush2.msra.mxu0 0.0
    %384 = vmatprep.mubr.f32.mxu0 0.0
    %385 = vmatmul.mubr.f32.gmra.mxu0 %v236
    %v386 = vpop.f32.mrf.mxu0
    %v387 = vadd.f32 0.0, %v386
    %v388 = vpop.f32.mrf.mxu0
    %v389 = vadd.f32 0.0, %v388
    %390 = vmatprep.mubr.f32.mxu0 0.0
    %391 = vmatmul.mubr.f32.gmra.mxu0 %v237
    %v392 = vpop.f32.mrf.mxu0
    %v393 = vadd.f32 0.0, %v392
    %v394 = vpop.f32.mrf.mxu0
    %v395 = vadd.f32 0.0, %v394
    %396 = vdwg.mxu0
    %397 = vmatprep.subr.mxu0 %v319
    %398 = vmatpush1.msra.mxu0 %v318
    %399 = vmatprep.subr.mxu0 %v315
    %400 = vmatpush1.msra.mxu0 %v314
    %401 = vmatprep.subr.mxu0 %v311
    %402 = vmatpush1.msra.mxu0 %v310
    %403 = vmatprep.subr.mxu0 %v307
    %404 = vmatpush1.msra.mxu0 %v306
    %405 = vmatprep.subr.mxu0 %v303
    %406 = vmatpush1.msra.mxu0 %v302
    %407 = vmatprep.subr.mxu0 %v299
    %408 = vmatpush1.msra.mxu0 %v298
    %409 = vmatprep.subr.mxu0 %v295
    %410 = vmatpush1.msra.mxu0 %v294
    %411 = vmatprep.subr.mxu0 %v291
    %412 = vmatpush1.msra.mxu0 %v290
    %413 = vmatprep.subr.mxu0 %v287
    %414 = vmatpush1.msra.mxu0 %v286
    %415 = vmatprep.subr.mxu0 %v283
    %416 = vmatpush1.msra.mxu0 %v282
    %417 = vmatprep.subr.mxu0 %v279
    %418 = vmatpush1.msra.mxu0 %v278
    %419 = vmatprep.subr.mxu0 %v275
    %420 = vmatpush1.msra.mxu0 %v274
    %421 = vmatprep.subr.mxu0 %v271
    %422 = vmatpush1.msra.mxu0 %v270
    %423 = vmatprep.subr.mxu0 %v267
    %424 = vmatpush1.msra.mxu0 %v266
    %425 = vmatprep.subr.mxu0 %v263
    %426 = vmatpush1.msra.mxu0 %v262
    %427 = vmatprep.subr.mxu0 %v259
    %428 = vmatpush1.msra.mxu0 %v258
    %429 = vmatprep.subr.mxu0 0.0
    %430 = vmatpush2.msra.mxu0 0.0
    %431 = vmatprep.subr.mxu0 0.0
    %432 = vmatpush2.msra.mxu0 0.0
    %433 = vmatprep.subr.mxu0 0.0
    %434 = vmatpush2.msra.mxu0 0.0
    %435 = vmatprep.subr.mxu0 0.0
    %436 = vmatpush2.msra.mxu0 0.0
    %437 = vmatprep.subr.mxu0 0.0
    %438 = vmatpush2.msra.mxu0 0.0
    %439 = vmatprep.subr.mxu0 0.0
    %440 = vmatpush2.msra.mxu0 0.0
    %441 = vmatprep.subr.mxu0 0.0
    %442 = vmatpush2.msra.mxu0 0.0
    %443 = vmatprep.subr.mxu0 0.0
    %444 = vmatpush2.msra.mxu0 0.0
    %445 = vmatprep.subr.mxu0 0.0
    %446 = vmatpush2.msra.mxu0 0.0
    %447 = vmatprep.subr.mxu0 0.0
    %448 = vmatpush2.msra.mxu0 0.0
    %449 = vmatprep.subr.mxu0 0.0
    %450 = vmatpush2.msra.mxu0 0.0
    %451 = vmatprep.subr.mxu0 0.0
    %452 = vmatpush2.msra.mxu0 0.0
    %453 = vmatprep.subr.mxu0 0.0
    %454 = vmatpush2.msra.mxu0 0.0
    %455 = vmatprep.subr.mxu0 0.0
    %456 = vmatpush2.msra.mxu0 0.0
    %457 = vmatprep.subr.mxu0 0.0
    %458 = vmatpush2.msra.mxu0 0.0
    %459 = vmatprep.subr.mxu0 0.0
    %460 = vmatpush2.msra.mxu0 0.0
    %461 = vmatprep.mubr.f32.mxu0 0.0
    %462 = vmatmul.mubr.f32.gmra.mxu0 %v236
    %v463 = vpop.f32.mrf.mxu0
    %v464 = vadd.f32 0.0, %v463
    %v465 = vpop.f32.mrf.mxu0
    %v466 = vadd.f32 0.0, %v465
    %467 = vmatprep.mubr.f32.mxu0 0.0
    %468 = vmatmul.mubr.f32.gmra.mxu0 %v237
    %v469 = vpop.f32.mrf.mxu0
    %v470 = vadd.f32 0.0, %v469
    %v471 = vpop.f32.mrf.mxu0
    %v472 = vadd.f32 0.0, %v471
    %473 = vdwg.mxu0
    %vm474 = vcmask 261120
    %v476 = vsel %vm474, %v234, 0
    %v479 = vsel %vm474, %v235, 0
    %481 = vmatprep.subr.mxu0 0.0
    %482 = vmatpush1.msra.mxu0 0.0
    %483 = vmatprep.subr.mxu0 0.0
    %484 = vmatpush1.msra.mxu0 0.0
    %485 = vmatprep.subr.mxu0 0.0
    %486 = vmatpush1.msra.mxu0 0.0
    %487 = vmatprep.subr.mxu0 0.0
    %488 = vmatpush1.msra.mxu0 0.0
    %489 = vmatprep.subr.mxu0 0.0
    %490 = vmatpush1.msra.mxu0 0.0
    %491 = vmatprep.subr.mxu0 0.0
    %492 = vmatpush1.msra.mxu0 0.0
    %493 = vmatprep.subr.mxu0 0.0
    %494 = vmatpush1.msra.mxu0 0.0
    %495 = vmatprep.subr.mxu0 0.0
    %496 = vmatpush1.msra.mxu0 0.0
    %497 = vmatprep.subr.mxu0 0.0
    %498 = vmatpush1.msra.mxu0 0.0
    %499 = vmatprep.subr.mxu0 0.0
    %500 = vmatpush1.msra.mxu0 0.0
    %501 = vmatprep.subr.mxu0 0.0
    %502 = vmatpush1.msra.mxu0 0.0
    %503 = vmatprep.subr.mxu0 0.0
    %504 = vmatpush1.msra.mxu0 0.0
    %505 = vmatprep.subr.mxu0 %v253
    %506 = vmatpush1.msra.mxu0 %v252
    %507 = vmatprep.subr.mxu0 %v249
    %508 = vmatpush1.msra.mxu0 %v248
    %509 = vmatprep.subr.mxu0 %v245
    %510 = vmatpush1.msra.mxu0 %v244
    %511 = vmatprep.subr.mxu0 %v241
    %512 = vmatpush1.msra.mxu0 %v240
    %513 = vmatprep.subr.mxu0 0.0
    %514 = vmatpush2.msra.mxu0 0.0
    %515 = vmatprep.subr.mxu0 0.0
    %516 = vmatpush2.msra.mxu0 0.0
    %517 = vmatprep.subr.mxu0 0.0
    %518 = vmatpush2.msra.mxu0 0.0
    %519 = vmatprep.subr.mxu0 0.0
    %520 = vmatpush2.msra.mxu0 0.0
    %521 = vmatprep.subr.mxu0 0.0
    %522 = vmatpush2.msra.mxu0 0.0
    %523 = vmatprep.subr.mxu0 0.0
    %524 = vmatpush2.msra.mxu0 0.0
    %525 = vmatprep.subr.mxu0 0.0
    %526 = vmatpush2.msra.mxu0 0.0
    %527 = vmatprep.subr.mxu0 0.0
    %528 = vmatpush2.msra.mxu0 0.0
    %529 = vmatprep.subr.mxu0 0.0
    %530 = vmatpush2.msra.mxu0 0.0
    %531 = vmatprep.subr.mxu0 0.0
    %532 = vmatpush2.msra.mxu0 0.0
    %533 = vmatprep.subr.mxu0 0.0
    %534 = vmatpush2.msra.mxu0 0.0
    %535 = vmatprep.subr.mxu0 0.0
    %536 = vmatpush2.msra.mxu0 0.0
    %537 = vmatprep.subr.mxu0 0.0
    %538 = vmatpush2.msra.mxu0 0.0
    %539 = vmatprep.subr.mxu0 0.0
    %540 = vmatpush2.msra.mxu0 0.0
    %541 = vmatprep.subr.mxu0 0.0
    %542 = vmatpush2.msra.mxu0 0.0
    %543 = vmatprep.subr.mxu0 0.0
    %544 = vmatpush2.msra.mxu0 0.0
    %545 = vmatprep.mubr.f32.mxu0 0.0
    %546 = vmatmul.mubr.f32.gmra.mxu0 %v476
    %v547 = vpop.f32.mrf.mxu0
    %v548 = vadd.f32 %v387, %v547
    %v549 = vpop.f32.mrf.mxu0
    %v550 = vadd.f32 %v389, %v549
    %551 = vmatprep.mubr.f32.mxu0 0.0
    %552 = vmatmul.mubr.f32.gmra.mxu0 %v479
    %v553 = vpop.f32.mrf.mxu0
    %v554 = vadd.f32 %v393, %v553
    %v555 = vpop.f32.mrf.mxu0
    %v556 = vadd.f32 %v395, %v555
    %557 = vdwg.mxu0
    %558 = vmatprep.subr.mxu0 0.0
    %559 = vmatpush1.msra.mxu0 0.0
    %560 = vmatprep.subr.mxu0 0.0
    %561 = vmatpush1.msra.mxu0 0.0
    %562 = vmatprep.subr.mxu0 0.0
    %563 = vmatpush1.msra.mxu0 0.0
    %564 = vmatprep.subr.mxu0 0.0
    %565 = vmatpush1.msra.mxu0 0.0
    %566 = vmatprep.subr.mxu0 0.0
    %567 = vmatpush1.msra.mxu0 0.0
    %568 = vmatprep.subr.mxu0 0.0
    %569 = vmatpush1.msra.mxu0 0.0
    %570 = vmatprep.subr.mxu0 0.0
    %571 = vmatpush1.msra.mxu0 0.0
    %572 = vmatprep.subr.mxu0 0.0
    %573 = vmatpush1.msra.mxu0 0.0
    %574 = vmatprep.subr.mxu0 0.0
    %575 = vmatpush1.msra.mxu0 0.0
    %576 = vmatprep.subr.mxu0 0.0
    %577 = vmatpush1.msra.mxu0 0.0
    %578 = vmatprep.subr.mxu0 0.0
    %579 = vmatpush1.msra.mxu0 0.0
    %580 = vmatprep.subr.mxu0 0.0
    %581 = vmatpush1.msra.mxu0 0.0
    %582 = vmatprep.subr.mxu0 %v255
    %583 = vmatpush1.msra.mxu0 %v254
    %584 = vmatprep.subr.mxu0 %v251
    %585 = vmatpush1.msra.mxu0 %v250
    %586 = vmatprep.subr.mxu0 %v247
    %587 = vmatpush1.msra.mxu0 %v246
    %588 = vmatprep.subr.mxu0 %v243
    %589 = vmatpush1.msra.mxu0 %v242
    %590 = vmatprep.subr.mxu0 0.0
    %591 = vmatpush2.msra.mxu0 0.0
    %592 = vmatprep.subr.mxu0 0.0
    %593 = vmatpush2.msra.mxu0 0.0
    %594 = vmatprep.subr.mxu0 0.0
    %595 = vmatpush2.msra.mxu0 0.0
    %596 = vmatprep.subr.mxu0 0.0
    %597 = vmatpush2.msra.mxu0 0.0
    %598 = vmatprep.subr.mxu0 0.0
    %599 = vmatpush2.msra.mxu0 0.0
    %600 = vmatprep.subr.mxu0 0.0
    %601 = vmatpush2.msra.mxu0 0.0
    %602 = vmatprep.subr.mxu0 0.0
    %603 = vmatpush2.msra.mxu0 0.0
    %604 = vmatprep.subr.mxu0 0.0
    %605 = vmatpush2.msra.mxu0 0.0
    %606 = vmatprep.subr.mxu0 0.0
    %607 = vmatpush2.msra.mxu0 0.0
    %608 = vmatprep.subr.mxu0 0.0
    %609 = vmatpush2.msra.mxu0 0.0
    %610 = vmatprep.subr.mxu0 0.0
    %611 = vmatpush2.msra.mxu0 0.0
    %612 = vmatprep.subr.mxu0 0.0
    %613 = vmatpush2.msra.mxu0 0.0
    %614 = vmatprep.subr.mxu0 0.0
    %615 = vmatpush2.msra.mxu0 0.0
    %616 = vmatprep.subr.mxu0 0.0
    %617 = vmatpush2.msra.mxu0 0.0
    %618 = vmatprep.subr.mxu0 0.0
    %619 = vmatpush2.msra.mxu0 0.0
    %620 = vmatprep.subr.mxu0 0.0
    %621 = vmatpush2.msra.mxu0 0.0
    %622 = vmatprep.mubr.f32.mxu0 0.0
    %623 = vmatmul.mubr.f32.gmra.mxu0 %v476
    %v624 = vpop.f32.mrf.mxu0
    %v625 = vadd.f32 %v464, %v624
    %v626 = vpop.f32.mrf.mxu0
    %v627 = vadd.f32 %v466, %v626
    %628 = vmatprep.mubr.f32.mxu0 0.0
    %629 = vmatmul.mubr.f32.gmra.mxu0 %v479
    %v630 = vpop.f32.mrf.mxu0
    %v631 = vadd.f32 %v470, %v630
    %v632 = vpop.f32.mrf.mxu0
    %v633 = vadd.f32 %v472, %v632
    %634 = vdwg.mxu0
    %v635 = vld [vmem:[%s10] sm:$0xf]
    %v637 = vlaneseq
    %v638 = vshrl.u32 %v637, 7
    %v639 = vsub.s32 0, %v638
    %v640 = vrot.slane %v635, %v639
    %v641 = vlaneseq
    %v642 = vshrl.u32 %v641, 7
    %v643 = vsub.s32 1, %v642
    %v644 = vrot.slane %v635, %v643
    %v645 = vlaneseq
    %v646 = vshrl.u32 %v645, 7
    %v647 = vsub.s32 2, %v646
    %v648 = vrot.slane %v635, %v647
    %v649 = vlaneseq
    %v650 = vshrl.u32 %v649, 7
    %v651 = vsub.s32 3, %v650
    %v652 = vrot.slane %v635, %v651
    %v657 = vadd.f32 %v548, %v640
    %v658 = vadd.f32 %v550, %v644
    %v659 = vadd.f32 %v625, %v648
    %v660 = vadd.f32 %v627, %v652
    %v661 = vadd.f32 %v554, %v640
    %v662 = vadd.f32 %v556, %v644
    %v663 = vadd.f32 %v631, %v648
    %v664 = vadd.f32 %v633, %v652
    %v665 = vxor.u32 %v657, 2147483648
    %v666 = vxor.u32 %v661, 2147483648
    %v667 = vmul.f32 %v665, 1.442695
    %v668 = vpow.pop %v667
    %v669 = vmul.f32 %v666, 1.442695
    %v670 = vpow.pop %v669
    %v671 = vadd.f32 %v668, 1.0
    %v672 = vadd.f32 %v670, 1.0
    %v673 = vrcp.pop %v671
    %v674 = vmul.f32 1.0, %v673
    %v675 = vrcp.pop %v672
    %v676 = vmul.f32 1.0, %v675
    %v677 = vxor.u32 %v658, 2147483648
    %v678 = vxor.u32 %v662, 2147483648
    %v679 = vmul.f32 %v677, 1.442695
    %v680 = vpow.pop %v679
    %v681 = vmul.f32 %v678, 1.442695
    %v682 = vpow.pop %v681
    %v683 = vadd.f32 %v680, 1.0
    %v684 = vadd.f32 %v682, 1.0
    %v685 = vrcp.pop %v683
    %v686 = vmul.f32 1.0, %v685
    %v687 = vrcp.pop %v684
    %v688 = vmul.f32 1.0, %v687
    %v689 = vtanh.pop %v659
    %v690 = vtanh.pop %v663
    %v691 = vxor.u32 %v660, 2147483648
    %v692 = vxor.u32 %v664, 2147483648
    %v693 = vmul.f32 %v691, 1.442695
    %v694 = vpow.pop %v693
    %v695 = vmul.f32 %v692, 1.442695
    %v696 = vpow.pop %v695
    %v697 = vadd.f32 %v694, 1.0
    %v698 = vadd.f32 %v696, 1.0
    %v699 = vrcp.pop %v697
    %v700 = vmul.f32 1.0, %v699
    %v701 = vrcp.pop %v698
    %v702 = vmul.f32 1.0, %v701
    %v703 = vmul.f32 %v686, %v238
    %v704 = vmul.f32 %v688, %v239
    %v705 = vmul.f32 %v674, %v689
    %v706 = vmul.f32 %v676, %v690
    %v707 = vadd.f32 %v703, %v705
    %v708 = vadd.f32 %v704, %v706
    %v709 = vtanh.pop %v707
    %v710 = vtanh.pop %v708
    %v711 = vmul.f32 %v700, %v709
    %v712 = vmul.f32 %v702, %v710
    %v713 = vld [vmem:[%s4] sm:$0xff]
    %v714 = vld [vmem:[%s4 + $0x8] sm:$0xff]
    %vm715 = vcmp.gt.f32.partialorder %v713, 0.5
    %vm716 = vcmp.gt.f32.partialorder %v714, 0.5
    %v717 = vsel %vm715, 1, 0
    %v718 = vsel %vm716, 1, 0
    %719 = vset.pattern.permute.xlu0 0
    %720 = vperm.xlu0 %719, %v717
    %v721 = vpop.permute.xlu0 %720
    %722 = vset.pattern.permute.xlu0 0
    %723 = vperm.xlu0 %722, %v718
    %v724 = vpop.permute.xlu0 %723
    %vm725 = vcmp.eq.s32.totalorder %v721, 1
    %vm726 = vcmp.eq.s32.totalorder %v724, 1
    %v727 = vsel %vm725, %v236, %v711
    %v728 = vsel %vm726, %v237, %v712
    %729 = vst [vmem:[%s20] sm:$0xff] %v727
    %730 = vst [vmem:[%s20 + $0x8] sm:$0xff] %v728
    %v731 = vsel %vm725, %v238, %v707
    %v732 = vsel %vm726, %v239, %v708
    %733 = vst [vmem:[%s21] sm:$0xff] %v731
    %734 = vst [vmem:[%s21 + $0x8] sm:$0xff] %v732
    %v735 = vld [vmem:[#allocation2] sm:$0xf]
    %v736 = vld [vmem:[#allocation10] sm:$0xff]
    %v737 = vld [vmem:[#allocation10 + $0x8] sm:$0xff]
    %v738 = vld [vmem:[#allocation10 + $0x10] sm:$0xff]
    %v739 = vld [vmem:[#allocation10 + $0x18] sm:$0xff]
    %v740 = vld [vmem:[#allocation10 + $0x20] sm:$0xff]
    %v741 = vld [vmem:[#allocation10 + $0x28] sm:$0xff]
    %v742 = vld [vmem:[#allocation10 + $0x30] sm:$0xff]
    %v743 = vld [vmem:[#allocation10 + $0x38] sm:$0xff]
    %v744 = vld [vmem:[#allocation10 + $0x40] sm:$0xff]
    %v745 = vld [vmem:[#allocation10 + $0x48] sm:$0xff]
    %v746 = vld [vmem:[#allocation10 + $0x50] sm:$0xff]
    %v747 = vld [vmem:[#allocation10 + $0x58] sm:$0xff]
    %v748 = vld [vmem:[#allocation10 + $0x60] sm:$0xff]
    %v749 = vld [vmem:[#allocation10 + $0x68] sm:$0xff]
    %v750 = vld [vmem:[#allocation10 + $0x70] sm:$0xff]
    %v751 = vld [vmem:[#allocation10 + $0x78] sm:$0xff]
    %v752 = vld [vmem:[#allocation10 + $0x80] sm:$0xff]
    %v753 = vld [vmem:[#allocation10 + $0x88] sm:$0xff]
    %v754 = vld [vmem:[#allocation10 + $0x90] sm:$0xff]
    %v755 = vld [vmem:[#allocation10 + $0x98] sm:$0xff]
    %v756 = vld [vmem:[#allocation10 + $0xa0] sm:$0xff]
    %v757 = vld [vmem:[#allocation10 + $0xa8] sm:$0xff]
    %v758 = vld [vmem:[#allocation10 + $0xb0] sm:$0xff]
    %v759 = vld [vmem:[#allocation10 + $0xb8] sm:$0xff]
    %v760 = vld [vmem:[#allocation10 + $0xc0] sm:$0xff]
    %v761 = vld [vmem:[#allocation10 + $0xc8] sm:$0xff]
    %v762 = vld [vmem:[#allocation10 + $0xd0] sm:$0xff]
    %v763 = vld [vmem:[#allocation10 + $0xd8] sm:$0xff]
    %v764 = vld [vmem:[#allocation10 + $0xe0] sm:$0xff]
    %v765 = vld [vmem:[#allocation10 + $0xe8] sm:$0xff]
    %v766 = vld [vmem:[#allocation10 + $0xf0] sm:$0xff]
    %v767 = vld [vmem:[#allocation10 + $0xf8] sm:$0xff]
    %v768 = vld [vmem:[#allocation10 + $0x100] sm:$0xff]
    %v769 = vld [vmem:[#allocation10 + $0x108] sm:$0xff]
    %v770 = vld [vmem:[#allocation10 + $0x110] sm:$0xff]
    %v771 = vld [vmem:[#allocation10 + $0x118] sm:$0xff]
    %v772 = vld [vmem:[#allocation10 + $0x120] sm:$0xff]
    %v773 = vld [vmem:[#allocation10 + $0x128] sm:$0xff]
    %v774 = vld [vmem:[#allocation10 + $0x130] sm:$0xff]
    %v775 = vld [vmem:[#allocation10 + $0x138] sm:$0xff]
    %v776 = vld [vmem:[#allocation10 + $0x140] sm:$0xff]
    %v777 = vld [vmem:[#allocation10 + $0x148] sm:$0xff]
    %v778 = vld [vmem:[#allocation10 + $0x150] sm:$0xff]
    %v779 = vld [vmem:[#allocation10 + $0x158] sm:$0xff]
    %v780 = vld [vmem:[#allocation10 + $0x160] sm:$0xff]
    %v781 = vld [vmem:[#allocation10 + $0x168] sm:$0xff]
    %v782 = vld [vmem:[#allocation10 + $0x170] sm:$0xff]
    %v783 = vld [vmem:[#allocation10 + $0x178] sm:$0xff]
    %v784 = vld [vmem:[#allocation11] sm:$0x7]
    %v786 = vlaneseq
    %v787 = vshrl.u32 %v786, 7
    %v788 = vsub.s32 0, %v787
    %v789 = vrot.slane %v784, %v788
    %v790 = vlaneseq
    %v791 = vshrl.u32 %v790, 7
    %v792 = vsub.s32 1, %v791
    %v793 = vrot.slane %v784, %v792
    %v794 = vlaneseq
    %v795 = vshrl.u32 %v794, 7
    %v796 = vsub.s32 2, %v795
    %v797 = vrot.slane %v784, %v796
    %801 = vmatprep.subr.mxu0 %v782
    %802 = vmatpush1.msra.mxu0 %v781
    %803 = vmatprep.subr.mxu0 %v779
    %804 = vmatpush1.msra.mxu0 %v778
    %805 = vmatprep.subr.mxu0 %v776
    %806 = vmatpush1.msra.mxu0 %v775
    %807 = vmatprep.subr.mxu0 %v773
    %808 = vmatpush1.msra.mxu0 %v772
    %809 = vmatprep.subr.mxu0 %v770
    %810 = vmatpush1.msra.mxu0 %v769
    %811 = vmatprep.subr.mxu0 %v767
    %812 = vmatpush1.msra.mxu0 %v766
    %813 = vmatprep.subr.mxu0 %v764
    %814 = vmatpush1.msra.mxu0 %v763
    %815 = vmatprep.subr.mxu0 %v761
    %816 = vmatpush1.msra.mxu0 %v760
    %817 = vmatprep.subr.mxu0 %v758
    %818 = vmatpush1.msra.mxu0 %v757
    %819 = vmatprep.subr.mxu0 %v755
    %820 = vmatpush1.msra.mxu0 %v754
    %821 = vmatprep.subr.mxu0 %v752
    %822 = vmatpush1.msra.mxu0 %v751
    %823 = vmatprep.subr.mxu0 %v749
    %824 = vmatpush1.msra.mxu0 %v748
    %825 = vmatprep.subr.mxu0 %v746
    %826 = vmatpush1.msra.mxu0 %v745
    %827 = vmatprep.subr.mxu0 %v743
    %828 = vmatpush1.msra.mxu0 %v742
    %829 = vmatprep.subr.mxu0 %v740
    %830 = vmatpush1.msra.mxu0 %v739
    %831 = vmatprep.subr.mxu0 %v737
    %832 = vmatpush1.msra.mxu0 %v736
    %833 = vmatprep.subr.mxu0 0.0
    %834 = vmatpush2.msra.mxu0 0.0
    %835 = vmatprep.subr.mxu0 0.0
    %836 = vmatpush2.msra.mxu0 0.0
    %837 = vmatprep.subr.mxu0 0.0
    %838 = vmatpush2.msra.mxu0 0.0
    %839 = vmatprep.subr.mxu0 0.0
    %840 = vmatpush2.msra.mxu0 0.0
    %841 = vmatprep.subr.mxu0 0.0
    %842 = vmatpush2.msra.mxu0 0.0
    %843 = vmatprep.subr.mxu0 0.0
    %844 = vmatpush2.msra.mxu0 0.0
    %845 = vmatprep.subr.mxu0 0.0
    %846 = vmatpush2.msra.mxu0 0.0
    %847 = vmatprep.subr.mxu0 0.0
    %848 = vmatpush2.msra.mxu0 0.0
    %849 = vmatprep.subr.mxu0 0.0
    %850 = vmatpush2.msra.mxu0 0.0
    %851 = vmatprep.subr.mxu0 0.0
    %852 = vmatpush2.msra.mxu0 0.0
    %853 = vmatprep.subr.mxu0 0.0
    %854 = vmatpush2.msra.mxu0 0.0
    %855 = vmatprep.subr.mxu0 0.0
    %856 = vmatpush2.msra.mxu0 0.0
    %857 = vmatprep.subr.mxu0 0.0
    %858 = vmatpush2.msra.mxu0 0.0
    %859 = vmatprep.subr.mxu0 0.0
    %860 = vmatpush2.msra.mxu0 0.0
    %861 = vmatprep.subr.mxu0 0.0
    %862 = vmatpush2.msra.mxu0 0.0
    %863 = vmatprep.subr.mxu0 0.0
    %864 = vmatpush2.msra.mxu0 0.0
    %865 = vmatprep.mubr.f32.mxu0 0.0
    %866 = vmatmul.mubr.f32.gmra.mxu0 %v735
    %v867 = vpop.f32.mrf.mxu0
    %v868 = vadd.f32 %v789, %v867
    %v869 = vpop.f32.mrf.mxu0
    %v870 = vadd.f32 %v793, %v869
    %871 = vdwg.mxu0
    %872 = vmatprep.subr.mxu0 0.0
    %873 = vmatpush1.msra.mxu0 %v783
    %874 = vmatprep.subr.mxu0 0.0
    %875 = vmatpush1.msra.mxu0 %v780
    %876 = vmatprep.subr.mxu0 0.0
    %877 = vmatpush1.msra.mxu0 %v777
    %878 = vmatprep.subr.mxu0 0.0
    %879 = vmatpush1.msra.mxu0 %v774
    %880 = vmatprep.subr.mxu0 0.0
    %881 = vmatpush1.msra.mxu0 %v771
    %882 = vmatprep.subr.mxu0 0.0
    %883 = vmatpush1.msra.mxu0 %v768
    %884 = vmatprep.subr.mxu0 0.0
    %885 = vmatpush1.msra.mxu0 %v765
    %886 = vmatprep.subr.mxu0 0.0
    %887 = vmatpush1.msra.mxu0 %v762
    %888 = vmatprep.subr.mxu0 0.0
    %889 = vmatpush1.msra.mxu0 %v759
    %890 = vmatprep.subr.mxu0 0.0
    %891 = vmatpush1.msra.mxu0 %v756
    %892 = vmatprep.subr.mxu0 0.0
    %893 = vmatpush1.msra.mxu0 %v753
    %894 = vmatprep.subr.mxu0 0.0
    %895 = vmatpush1.msra.mxu0 %v750
    %896 = vmatprep.subr.mxu0 0.0
    %897 = vmatpush1.msra.mxu0 %v747
    %898 = vmatprep.subr.mxu0 0.0
    %899 = vmatpush1.msra.mxu0 %v744
    %900 = vmatprep.subr.mxu0 0.0
    %901 = vmatpush1.msra.mxu0 %v741
    %902 = vmatprep.subr.mxu0 0.0
    %903 = vmatpush1.msra.mxu0 %v738
    %904 = vmatprep.subr.mxu0 0.0
    %905 = vmatpush2.msra.mxu0 0.0
    %906 = vmatprep.subr.mxu0 0.0
    %907 = vmatpush2.msra.mxu0 0.0
    %908 = vmatprep.subr.mxu0 0.0
    %909 = vmatpush2.msra.mxu0 0.0
    %910 = vmatprep.subr.mxu0 0.0
    %911 = vmatpush2.msra.mxu0 0.0
    %912 = vmatprep.subr.mxu0 0.0
    %913 = vmatpush2.msra.mxu0 0.0
    %914 = vmatprep.subr.mxu0 0.0
    %915 = vmatpush2.msra.mxu0 0.0
    %916 = vmatprep.subr.mxu0 0.0
    %917 = vmatpush2.msra.mxu0 0.0
    %918 = vmatprep.subr.mxu0 0.0
    %919 = vmatpush2.msra.mxu0 0.0
    %920 = vmatprep.subr.mxu0 0.0
    %921 = vmatpush2.msra.mxu0 0.0
    %922 = vmatprep.subr.mxu0 0.0
    %923 = vmatpush2.msra.mxu0 0.0
    %924 = vmatprep.subr.mxu0 0.0
    %925 = vmatpush2.msra.mxu0 0.0
    %926 = vmatprep.subr.mxu0 0.0
    %927 = vmatpush2.msra.mxu0 0.0
    %928 = vmatprep.subr.mxu0 0.0
    %929 = vmatpush2.msra.mxu0 0.0
    %930 = vmatprep.subr.mxu0 0.0
    %931 = vmatpush2.msra.mxu0 0.0
    %932 = vmatprep.subr.mxu0 0.0
    %933 = vmatpush2.msra.mxu0 0.0
    %934 = vmatprep.subr.mxu0 0.0
    %935 = vmatpush2.msra.mxu0 0.0
    %936 = vmatprep.mubr.f32.mxu0 0.0
    %937 = vmatmul.mubr.f32.gmra.mxu0 %v735
    %v938 = vpop.f32.mrf.mxu0
    %v939 = vadd.f32 %v797, %v938
    %v940 = vpop.f32.mrf.mxu0
    %941 = vdwg.mxu0
    %v942 = vld [vmem:[%s13] sm:$0xff]
    %v943 = vld [vmem:[%s13 + $0x8] sm:$0xff]
    %v944 = vld [vmem:[%s13 + $0x10] sm:$0xff]
    %v945 = vld [vmem:[%s13 + $0x18] sm:$0xff]
    %v946 = vld [vmem:[%s13 + $0x20] sm:$0xff]
    %v947 = vld [vmem:[%s13 + $0x28] sm:$0xff]
    %v948 = vld [vmem:[%s13 + $0x30] sm:$0xff]
    %v949 = vld [vmem:[%s13 + $0x38] sm:$0xff]
    %v950 = vld [vmem:[%s13 + $0x40] sm:$0xff]
    %v951 = vld [vmem:[%s13 + $0x48] sm:$0xff]
    %v952 = vld [vmem:[%s13 + $0x50] sm:$0xff]
    %v953 = vld [vmem:[%s13 + $0x58] sm:$0xff]
    %v954 = vld [vmem:[%s13 + $0x60] sm:$0xff]
    %v955 = vld [vmem:[%s13 + $0x68] sm:$0xff]
    %v956 = vld [vmem:[%s13 + $0x70] sm:$0xff]
    %v957 = vld [vmem:[%s13 + $0x78] sm:$0xff]
    %v958 = vld [vmem:[%s13 + $0x80] sm:$0xff]
    %v959 = vld [vmem:[%s13 + $0x88] sm:$0xff]
    %v960 = vld [vmem:[%s13 + $0x90] sm:$0xff]
    %v961 = vld [vmem:[%s13 + $0x98] sm:$0xff]
    %v962 = vld [vmem:[%s13 + $0xa0] sm:$0xff]
    %v963 = vld [vmem:[%s13 + $0xa8] sm:$0xff]
    %v964 = vld [vmem:[%s13 + $0xb0] sm:$0xff]
    %v965 = vld [vmem:[%s13 + $0xb8] sm:$0xff]
    %v966 = vld [vmem:[%s13 + $0xc0] sm:$0xff]
    %v967 = vld [vmem:[%s13 + $0xc8] sm:$0xff]
    %v968 = vld [vmem:[%s13 + $0xd0] sm:$0xff]
    %v969 = vld [vmem:[%s13 + $0xd8] sm:$0xff]
    %v970 = vld [vmem:[%s13 + $0xe0] sm:$0xff]
    %v971 = vld [vmem:[%s13 + $0xe8] sm:$0xff]
    %v972 = vld [vmem:[%s13 + $0xf0] sm:$0xff]
    %v973 = vld [vmem:[%s13 + $0xf8] sm:$0xff]
    %v974 = vld [vmem:[#allocation13] sm:$0x3]
    %v976 = vlaneseq
    %v977 = vshrl.u32 %v976, 7
    %v978 = vsub.s32 0, %v977
    %v979 = vrot.slane %v974, %v978
    %v980 = vlaneseq
    %v981 = vshrl.u32 %v980, 7
    %v982 = vsub.s32 1, %v981
    %v983 = vrot.slane %v974, %v982
    %986 = vmatprep.subr.mxu0 %v973
    %987 = vmatpush1.msra.mxu0 %v972
    %988 = vmatprep.subr.mxu0 %v971
    %989 = vmatpush1.msra.mxu0 %v970
    %990 = vmatprep.subr.mxu0 %v969
    %991 = vmatpush1.msra.mxu0 %v968
    %992 = vmatprep.subr.mxu0 %v967
    %993 = vmatpush1.msra.mxu0 %v966
    %994 = vmatprep.subr.mxu0 %v965
    %995 = vmatpush1.msra.mxu0 %v964
    %996 = vmatprep.subr.mxu0 %v963
    %997 = vmatpush1.msra.mxu0 %v962
    %998 = vmatprep.subr.mxu0 %v961
    %999 = vmatpush1.msra.mxu0 %v960
    %1000 = vmatprep.subr.mxu0 %v959
    %1001 = vmatpush1.msra.mxu0 %v958
    %1002 = vmatprep.subr.mxu0 %v957
    %1003 = vmatpush1.msra.mxu0 %v956
    %1004 = vmatprep.subr.mxu0 %v955
    %1005 = vmatpush1.msra.mxu0 %v954
    %1006 = vmatprep.subr.mxu0 %v953
    %1007 = vmatpush1.msra.mxu0 %v952
    %1008 = vmatprep.subr.mxu0 %v951
    %1009 = vmatpush1.msra.mxu0 %v950
    %1010 = vmatprep.subr.mxu0 %v949
    %1011 = vmatpush1.msra.mxu0 %v948
    %1012 = vmatprep.subr.mxu0 %v947
    %1013 = vmatpush1.msra.mxu0 %v946
    %1014 = vmatprep.subr.mxu0 %v945
    %1015 = vmatpush1.msra.mxu0 %v944
    %1016 = vmatprep.subr.mxu0 %v943
    %1017 = vmatpush1.msra.mxu0 %v942
    %1018 = vmatprep.subr.mxu0 0.0
    %1019 = vmatpush2.msra.mxu0 0.0
    %1020 = vmatprep.subr.mxu0 0.0
    %1021 = vmatpush2.msra.mxu0 0.0
    %1022 = vmatprep.subr.mxu0 0.0
    %1023 = vmatpush2.msra.mxu0 0.0
    %1024 = vmatprep.subr.mxu0 0.0
    %1025 = vmatpush2.msra.mxu0 0.0
    %1026 = vmatprep.subr.mxu0 0.0
    %1027 = vmatpush2.msra.mxu0 0.0
    %1028 = vmatprep.subr.mxu0 0.0
    %1029 = vmatpush2.msra.mxu0 0.0
    %1030 = vmatprep.subr.mxu0 0.0
    %1031 = vmatpush2.msra.mxu0 0.0
    %1032 = vmatprep.subr.mxu0 0.0
    %1033 = vmatpush2.msra.mxu0 0.0
    %1034 = vmatprep.subr.mxu0 0.0
    %1035 = vmatpush2.msra.mxu0 0.0
    %1036 = vmatprep.subr.mxu0 0.0
    %1037 = vmatpush2.msra.mxu0 0.0
    %1038 = vmatprep.subr.mxu0 0.0
    %1039 = vmatpush2.msra.mxu0 0.0
    %1040 = vmatprep.subr.mxu0 0.0
    %1041 = vmatpush2.msra.mxu0 0.0
    %1042 = vmatprep.subr.mxu0 0.0
    %1043 = vmatpush2.msra.mxu0 0.0
    %1044 = vmatprep.subr.mxu0 0.0
    %1045 = vmatpush2.msra.mxu0 0.0
    %1046 = vmatprep.subr.mxu0 0.0
    %1047 = vmatpush2.msra.mxu0 0.0
    %1048 = vmatprep.subr.mxu0 0.0
    %1049 = vmatpush2.msra.mxu0 0.0
    %1050 = vmatprep.mubr.f32.mxu0 0.0
    %1051 = vmatmul.mubr.f32.gmra.mxu0 %v711
    %v1052 = vpop.f32.mrf.mxu0
    %v1053 = vadd.f32 %v979, %v1052
    %v1054 = vpop.f32.mrf.mxu0
    %v1055 = vadd.f32 %v983, %v1054
    %1056 = vmatprep.mubr.f32.mxu0 0.0
    %1057 = vmatmul.mubr.f32.gmra.mxu0 %v712
    %v1058 = vpop.f32.mrf.mxu0
    %v1059 = vadd.f32 %v979, %v1058
    %v1060 = vpop.f32.mrf.mxu0
    %v1061 = vadd.f32 %v983, %v1060
    %1062 = vdwg.mxu0
    %v1063 = vmul.f32 %v868, 0.088388346
    %v1064 = vmul.f32 %v1063, %v870
    %vm1065 = vcmask 1043456
    %v1066 = vsel %vm1065, %v1064, 0.0
    %1067 = vadd.xlane.f32.xlu0 %v1066
    %v1068 = vpop.xlane.xlu0 %1067
    %1069 = vmatprep.subr.mxu0 0.0
    %1070 = vmatpush1.xpose.msra.mxu0 0.0
    %1071 = vmatprep.subr.mxu0 0.0
    %1072 = vmatpush1.xpose.msra.mxu0 0.0
    %1073 = vmatprep.subr.mxu0 0.0
    %1074 = vmatpush1.xpose.msra.mxu0 0.0
    %1075 = vmatprep.subr.mxu0 0.0
    %1076 = vmatpush1.xpose.msra.mxu0 0.0
    %1077 = vmatprep.subr.mxu0 0.0
    %1078 = vmatpush1.xpose.msra.mxu0 0.0
    %1079 = vmatprep.subr.mxu0 0.0
    %1080 = vmatpush1.xpose.msra.mxu0 0.0
    %1081 = vmatprep.subr.mxu0 0.0
    %1082 = vmatpush1.xpose.msra.mxu0 0.0
    %1083 = vmatprep.subr.mxu0 0.0
    %1084 = vmatpush1.xpose.msra.mxu0 0.0
    %1085 = vmatprep.subr.mxu0 0.0
    %1086 = vmatpush1.xpose.msra.mxu0 0.0
    %1087 = vmatprep.subr.mxu0 0.0
    %1088 = vmatpush1.xpose.msra.mxu0 0.0
    %1089 = vmatprep.subr.mxu0 0.0
    %1090 = vmatpush1.xpose.msra.mxu0 0.0
    %1091 = vmatprep.subr.mxu0 0.0
    %1092 = vmatpush1.xpose.msra.mxu0 0.0
    %1093 = vmatprep.subr.mxu0 0.0
    %1094 = vmatpush1.xpose.msra.mxu0 0.0
    %1095 = vmatprep.subr.mxu0 0.0
    %1096 = vmatpush1.xpose.msra.mxu0 0.0
    %1097 = vmatprep.subr.mxu0 0.0
    %1098 = vmatpush1.xpose.msra.mxu0 %v1059
    %1099 = vmatprep.subr.mxu0 0.0
    %1100 = vmatpush1.xpose.msra.mxu0 %v1053
    %1101 = vmatprep.subr.mxu0 0.0
    %1102 = vmatpush2.xpose.msra.mxu0 0.0
    %1103 = vmatprep.subr.mxu0 0.0
    %1104 = vmatpush2.xpose.msra.mxu0 0.0
    %1105 = vmatprep.subr.mxu0 0.0
    %1106 = vmatpush2.xpose.msra.mxu0 0.0
    %1107 = vmatprep.subr.mxu0 0.0
    %1108 = vmatpush2.xpose.msra.mxu0 0.0
    %1109 = vmatprep.subr.mxu0 0.0
    %1110 = vmatpush2.xpose.msra.mxu0 0.0
    %1111 = vmatprep.subr.mxu0 0.0
    %1112 = vmatpush2.xpose.msra.mxu0 0.0
    %1113 = vmatprep.subr.mxu0 0.0
    %1114 = vmatpush2.xpose.msra.mxu0 0.0
    %1115 = vmatprep.subr.mxu0 0.0
    %1116 = vmatpush2.xpose.msra.mxu0 0.0
    %1117 = vmatprep.subr.mxu0 0.0
    %1118 = vmatpush2.xpose.msra.mxu0 0.0
    %1119 = vmatprep.subr.mxu0 0.0
    %1120 = vmatpush2.xpose.msra.mxu0 0.0
    %1121 = vmatprep.subr.mxu0 0.0
    %1122 = vmatpush2.xpose.msra.mxu0 0.0
    %1123 = vmatprep.subr.mxu0 0.0
    %1124 = vmatpush2.xpose.msra.mxu0 0.0
    %1125 = vmatprep.subr.mxu0 0.0
    %1126 = vmatpush2.xpose.msra.mxu0 0.0
    %1127 = vmatprep.subr.mxu0 0.0
    %1128 = vmatpush2.xpose.msra.mxu0 0.0
    %1129 = vmatprep.subr.mxu0 0.0
    %1130 = vmatpush2.xpose.msra.mxu0 0.0
    %1131 = vmatprep.subr.mxu0 0.0
    %1132 = vmatpush2.xpose.msra.mxu0 0.0
    %1133 = vmatprep.mubr.f32.mxu0 0.0
    %1134 = vmatmul.mubr.f32.gmra.mxu0 %v1063
    %v1135 = vpop.f32.mrf.mxu0
    %v1136 = vadd.f32 0.0, %v1135
    %v1137 = vpop.f32.mrf.mxu0
    %1138 = vdwg.mxu0
    %v1139 = vld [vmem:[%s5] sm:$0xf]
    %v1140 = vmul.f32 %v1136, %v1139
    %v1141 = vsub.f32 1.0, %v1139
    %v1142 = vmul.f32 %v1141, 1e+30
    %v1143 = vsub.f32 %v1140, %v1142
    %vm1144 = vcmask 125952
    %v1145 = vsel %vm1144, %v1143, -inf
    %1146 = vmax.xlane.f32.xlu0 %v1145
    %v1147 = vpop.xlane.xlu0 %1146
    %v1148 = vmax.f32 %v1147, %v1068
    %v1149 = vsub.f32 %v1068, %v1148
    %v1150 = vmul.f32 %v1149, 1.442695
    %v1151 = vpow.pop %v1150
    %v1152 = vsub.f32 %v1143, %v1148
    %v1153 = vmul.f32 %v1152, 1.442695
    %v1154 = vpow.pop %v1153
    %v1155 = vmul.f32 %v1154, %v1139
    %v1156 = vsel %vm1144, %v1155, 0.0
    %1157 = vadd.xlane.f32.xlu0 %v1156
    %v1158 = vpop.xlane.xlu0 %1157
    %v1159 = vadd.f32 %v1151, %v1158
    %v1160 = vmul.f32 %v1151, %v939
    %vm1161 = vcmask 130048
    %v1163 = vsel %vm1161, %v1155, 0
    %1165 = vmatprep.subr.mxu0 0.0
    %1166 = vmatpush1.msra.mxu0 0.0
    %1167 = vmatprep.subr.mxu0 0.0
    %1168 = vmatpush1.msra.mxu0 0.0
    %1169 = vmatprep.subr.mxu0 0.0
    %1170 = vmatpush1.msra.mxu0 0.0
    %1171 = vmatprep.subr.mxu0 0.0
    %1172 = vmatpush1.msra.mxu0 0.0
    %1173 = vmatprep.subr.mxu0 0.0
    %1174 = vmatpush1.msra.mxu0 0.0
    %1175 = vmatprep.subr.mxu0 0.0
    %1176 = vmatpush1.msra.mxu0 0.0
    %1177 = vmatprep.subr.mxu0 0.0
    %1178 = vmatpush1.msra.mxu0 0.0
    %1179 = vmatprep.subr.mxu0 0.0
    %1180 = vmatpush1.msra.mxu0 0.0
    %1181 = vmatprep.subr.mxu0 0.0
    %1182 = vmatpush1.msra.mxu0 0.0
    %1183 = vmatprep.subr.mxu0 0.0
    %1184 = vmatpush1.msra.mxu0 0.0
    %1185 = vmatprep.subr.mxu0 0.0
    %1186 = vmatpush1.msra.mxu0 0.0
    %1187 = vmatprep.subr.mxu0 0.0
    %1188 = vmatpush1.msra.mxu0 0.0
    %1189 = vmatprep.subr.mxu0 0.0
    %1190 = vmatpush1.msra.mxu0 0.0
    %1191 = vmatprep.subr.mxu0 0.0
    %1192 = vmatpush1.msra.mxu0 0.0
    %1193 = vmatprep.subr.mxu0 0.0
    %1194 = vmatpush1.msra.mxu0 %v1061
    %1195 = vmatprep.subr.mxu0 0.0
    %1196 = vmatpush1.msra.mxu0 %v1055
    %1197 = vmatprep.subr.mxu0 0.0
    %1198 = vmatpush2.msra.mxu0 0.0
    %1199 = vmatprep.subr.mxu0 0.0
    %1200 = vmatpush2.msra.mxu0 0.0
    %1201 = vmatprep.subr.mxu0 0.0
    %1202 = vmatpush2.msra.mxu0 0.0
    %1203 = vmatprep.subr.mxu0 0.0
    %1204 = vmatpush2.msra.mxu0 0.0
    %1205 = vmatprep.subr.mxu0 0.0
    %1206 = vmatpush2.msra.mxu0 0.0
    %1207 = vmatprep.subr.mxu0 0.0
    %1208 = vmatpush2.msra.mxu0 0.0
    %1209 = vmatprep.subr.mxu0 0.0
    %1210 = vmatpush2.msra.mxu0 0.0
    %1211 = vmatprep.subr.mxu0 0.0
    %1212 = vmatpush2.msra.mxu0 0.0
    %1213 = vmatprep.subr.mxu0 0.0
    %1214 = vmatpush2.msra.mxu0 0.0
    %1215 = vmatprep.subr.mxu0 0.0
    %1216 = vmatpush2.msra.mxu0 0.0
    %1217 = vmatprep.subr.mxu0 0.0
    %1218 = vmatpush2.msra.mxu0 0.0
    %1219 = vmatprep.subr.mxu0 0.0
    %1220 = vmatpush2.msra.mxu0 0.0
    %1221 = vmatprep.subr.mxu0 0.0
    %1222 = vmatpush2.msra.mxu0 0.0
    %1223 = vmatprep.subr.mxu0 0.0
    %1224 = vmatpush2.msra.mxu0 0.0
    %1225 = vmatprep.subr.mxu0 0.0
    %1226 = vmatpush2.msra.mxu0 0.0
    %1227 = vmatprep.subr.mxu0 0.0
    %1228 = vmatpush2.msra.mxu0 0.0
    %1229 = vmatprep.mubr.f32.mxu0 0.0
    %1230 = vmatmul.mubr.f32.gmra.mxu0 %v1163
    %v1231 = vpop.f32.mrf.mxu0
    %v1232 = vadd.f32 0.0, %v1231
    %v1233 = vpop.f32.mrf.mxu0
    %1234 = vdwg.mxu0
    %v1235 = vadd.f32 %v1160, %v1232
    %v1236 = vrcp.pop %v1159
    %v1237 = vmul.f32 %v1235, %v1236
    %v1238 = vld [vmem:[#allocation14] sm:$0xff]
    %v1239 = vld [vmem:[#allocation14 + $0x8] sm:$0xff]
    %v1240 = vld [vmem:[#allocation14 + $0x10] sm:$0xff]
    %v1241 = vld [vmem:[#allocation14 + $0x18] sm:$0xff]
    %v1242 = vld [vmem:[#allocation14 + $0x20] sm:$0xff]
    %v1243 = vld [vmem:[#allocation14 + $0x28] sm:$0xff]
    %v1244 = vld [vmem:[#allocation14 + $0x30] sm:$0xff]
    %v1245 = vld [vmem:[#allocation14 + $0x38] sm:$0xff]
    %v1246 = vld [vmem:[#allocation14 + $0x40] sm:$0xff]
    %v1247 = vld [vmem:[#allocation14 + $0x48] sm:$0xff]
    %v1248 = vld [vmem:[#allocation14 + $0x50] sm:$0xff]
    %v1249 = vld [vmem:[#allocation14 + $0x58] sm:$0xff]
    %v1250 = vld [vmem:[#allocation14 + $0x60] sm:$0xff]
    %v1251 = vld [vmem:[#allocation14 + $0x68] sm:$0xff]
    %v1252 = vld [vmem:[#allocation14 + $0x70] sm:$0xff]
    %v1253 = vld [vmem:[#allocation14 + $0x78] sm:$0xff]
    %v1254 = vld [vmem:[#allocation16] sm:$0x1]
    %v1256 = vlaneseq
    %v1257 = vshrl.u32 %v1256, 7
    %v1258 = vsub.s32 0, %v1257
    %v1259 = vrot.slane %v1254, %v1258
    %1261 = vmatprep.subr.mxu0 0.0
    %1262 = vmatpush1.msra.mxu0 %v1253
    %1263 = vmatprep.subr.mxu0 0.0
    %1264 = vmatpush1.msra.mxu0 %v1252
    %1265 = vmatprep.subr.mxu0 0.0
    %1266 = vmatpush1.msra.mxu0 %v1251
    %1267 = vmatprep.subr.mxu0 0.0
    %1268 = vmatpush1.msra.mxu0 %v1250
    %1269 = vmatprep.subr.mxu0 0.0
    %1270 = vmatpush1.msra.mxu0 %v1249
    %1271 = vmatprep.subr.mxu0 0.0
    %1272 = vmatpush1.msra.mxu0 %v1248
    %1273 = vmatprep.subr.mxu0 0.0
    %1274 = vmatpush1.msra.mxu0 %v1247
    %1275 = vmatprep.subr.mxu0 0.0
    %1276 = vmatpush1.msra.mxu0 %v1246
    %1277 = vmatprep.subr.mxu0 0.0
    %1278 = vmatpush1.msra.mxu0 %v1245
    %1279 = vmatprep.subr.mxu0 0.0
    %1280 = vmatpush1.msra.mxu0 %v1244
    %1281 = vmatprep.subr.mxu0 0.0
    %1282 = vmatpush1.msra.mxu0 %v1243
    %1283 = vmatprep.subr.mxu0 0.0
    %1284 = vmatpush1.msra.mxu0 %v1242
    %1285 = vmatprep.subr.mxu0 0.0
    %1286 = vmatpush1.msra.mxu0 %v1241
    %1287 = vmatprep.subr.mxu0 0.0
    %1288 = vmatpush1.msra.mxu0 %v1240
    %1289 = vmatprep.subr.mxu0 0.0
    %1290 = vmatpush1.msra.mxu0 %v1239
    %1291 = vmatprep.subr.mxu0 0.0
    %1292 = vmatpush1.msra.mxu0 %v1238
    %1293 = vmatprep.subr.mxu0 0.0
    %1294 = vmatpush2.msra.mxu0 0.0
    %1295 = vmatprep.subr.mxu0 0.0
    %1296 = vmatpush2.msra.mxu0 0.0
    %1297 = vmatprep.subr.mxu0 0.0
    %1298 = vmatpush2.msra.mxu0 0.0
    %1299 = vmatprep.subr.mxu0 0.0
    %1300 = vmatpush2.msra.mxu0 0.0
    %1301 = vmatprep.subr.mxu0 0.0
    %1302 = vmatpush2.msra.mxu0 0.0
    %1303 = vmatprep.subr.mxu0 0.0
    %1304 = vmatpush2.msra.mxu0 0.0
    %1305 = vmatprep.subr.mxu0 0.0
    %1306 = vmatpush2.msra.mxu0 0.0
    %1307 = vmatprep.subr.mxu0 0.0
    %1308 = vmatpush2.msra.mxu0 0.0
    %1309 = vmatprep.subr.mxu0 0.0
    %1310 = vmatpush2.msra.mxu0 0.0
    %1311 = vmatprep.subr.mxu0 0.0
    %1312 = vmatpush2.msra.mxu0 0.0
    %1313 = vmatprep.subr.mxu0 0.0
    %1314 = vmatpush2.msra.mxu0 0.0
    %1315 = vmatprep.subr.mxu0 0.0
    %1316 = vmatpush2.msra.mxu0 0.0
    %1317 = vmatprep.subr.mxu0 0.0
    %1318 = vmatpush2.msra.mxu0 0.0
    %1319 = vmatprep.subr.mxu0 0.0
    %1320 = vmatpush2.msra.mxu0 0.0
    %1321 = vmatprep.subr.mxu0 0.0
    %1322 = vmatpush2.msra.mxu0 0.0
    %1323 = vmatprep.subr.mxu0 0.0
    %1324 = vmatpush2.msra.mxu0 0.0
    %1325 = vmatprep.mubr.f32.mxu0 0.0
    %1326 = vmatmul.mubr.f32.gmra.mxu0 %v1237
    %v1327 = vpop.f32.mrf.mxu0
    %v1328 = vadd.f32 %v1259, %v1327
    %v1329 = vpop.f32.mrf.mxu0
    %1330 = vdwg.mxu0
    %v1331 = vld [vmem:[%s17] sm:$0xff]
    %v1332 = vld [vmem:[%s17 + $0x8] sm:$0xff]
    %v1333 = vld [vmem:[%s17 + $0x10] sm:$0xff]
    %v1334 = vld [vmem:[%s17 + $0x18] sm:$0xff]
    %v1335 = vld [vmem:[%s17 + $0x20] sm:$0xff]
    %v1336 = vld [vmem:[%s17 + $0x28] sm:$0xff]
    %v1337 = vld [vmem:[%s17 + $0x30] sm:$0xff]
    %v1338 = vld [vmem:[%s17 + $0x38] sm:$0xff]
    %v1339 = vld [vmem:[%s17 + $0x40] sm:$0xff]
    %v1340 = vld [vmem:[%s17 + $0x48] sm:$0xff]
    %v1341 = vld [vmem:[%s17 + $0x50] sm:$0xff]
    %v1342 = vld [vmem:[%s17 + $0x58] sm:$0xff]
    %v1343 = vld [vmem:[%s17 + $0x60] sm:$0xff]
    %v1344 = vld [vmem:[%s17 + $0x68] sm:$0xff]
    %v1345 = vld [vmem:[%s17 + $0x70] sm:$0xff]
    %v1346 = vld [vmem:[%s17 + $0x78] sm:$0xff]
    %v1347 = vld [vmem:[#allocation17] sm:$0x1]
    %v1349 = vlaneseq
    %v1350 = vshrl.u32 %v1349, 7
    %v1351 = vsub.s32 0, %v1350
    %v1352 = vrot.slane %v1347, %v1351
    %1354 = vmatprep.subr.mxu0 0.0
    %1355 = vmatpush1.msra.mxu0 %v1346
    %1356 = vmatprep.subr.mxu0 0.0
    %1357 = vmatpush1.msra.mxu0 %v1345
    %1358 = vmatprep.subr.mxu0 0.0
    %1359 = vmatpush1.msra.mxu0 %v1344
    %1360 = vmatprep.subr.mxu0 0.0
    %1361 = vmatpush1.msra.mxu0 %v1343
    %1362 = vmatprep.subr.mxu0 0.0
    %1363 = vmatpush1.msra.mxu0 %v1342
    %1364 = vmatprep.subr.mxu0 0.0
    %1365 = vmatpush1.msra.mxu0 %v1341
    %1366 = vmatprep.subr.mxu0 0.0
    %1367 = vmatpush1.msra.mxu0 %v1340
    %1368 = vmatprep.subr.mxu0 0.0
    %1369 = vmatpush1.msra.mxu0 %v1339
    %1370 = vmatprep.subr.mxu0 0.0
    %1371 = vmatpush1.msra.mxu0 %v1338
    %1372 = vmatprep.subr.mxu0 0.0
    %1373 = vmatpush1.msra.mxu0 %v1337
    %1374 = vmatprep.subr.mxu0 0.0
    %1375 = vmatpush1.msra.mxu0 %v1336
    %1376 = vmatprep.subr.mxu0 0.0
    %1377 = vmatpush1.msra.mxu0 %v1335
    %1378 = vmatprep.subr.mxu0 0.0
    %1379 = vmatpush1.msra.mxu0 %v1334
    %1380 = vmatprep.subr.mxu0 0.0
    %1381 = vmatpush1.msra.mxu0 %v1333
    %1382 = vmatprep.subr.mxu0 0.0
    %1383 = vmatpush1.msra.mxu0 %v1332
    %1384 = vmatprep.subr.mxu0 0.0
    %1385 = vmatpush1.msra.mxu0 %v1331
    %1386 = vmatprep.subr.mxu0 0.0
    %1387 = vmatpush2.msra.mxu0 0.0
    %1388 = vmatprep.subr.mxu0 0.0
    %1389 = vmatpush2.msra.mxu0 0.0
    %1390 = vmatprep.subr.mxu0 0.0
    %1391 = vmatpush2.msra.mxu0 0.0
    %1392 = vmatprep.subr.mxu0 0.0
    %1393 = vmatpush2.msra.mxu0 0.0
    %1394 = vmatprep.subr.mxu0 0.0
    %1395 = vmatpush2.msra.mxu0 0.0
    %1396 = vmatprep.subr.mxu0 0.0
    %1397 = vmatpush2.msra.mxu0 0.0
    %1398 = vmatprep.subr.mxu0 0.0
    %1399 = vmatpush2.msra.mxu0 0.0
    %1400 = vmatprep.subr.mxu0 0.0
    %1401 = vmatpush2.msra.mxu0 0.0
    %1402 = vmatprep.subr.mxu0 0.0
    %1403 = vmatpush2.msra.mxu0 0.0
    %1404 = vmatprep.subr.mxu0 0.0
    %1405 = vmatpush2.msra.mxu0 0.0
    %1406 = vmatprep.subr.mxu0 0.0
    %1407 = vmatpush2.msra.mxu0 0.0
    %1408 = vmatprep.subr.mxu0 0.0
    %1409 = vmatpush2.msra.mxu0 0.0
    %1410 = vmatprep.subr.mxu0 0.0
    %1411 = vmatpush2.msra.mxu0 0.0
    %1412 = vmatprep.subr.mxu0 0.0
    %1413 = vmatpush2.msra.mxu0 0.0
    %1414 = vmatprep.subr.mxu0 0.0
    %1415 = vmatpush2.msra.mxu0 0.0
    %1416 = vmatprep.subr.mxu0 0.0
    %1417 = vmatpush2.msra.mxu0 0.0
    %1418 = vmatprep.mubr.f32.mxu0 0.0
    %1419 = vmatmul.mubr.f32.gmra.mxu0 %v1328
    %v1420 = vpop.f32.mrf.mxu0
    %v1421 = vadd.f32 %v1352, %v1420
    %v1422 = vpop.f32.mrf.mxu0
    %1423 = vdwg.mxu0
    %vm1424 = vcmask 257024
    %1425 = vst.msk [vmem:[#allocation19] sm:$0xf] %vm1424, %v1421
    // Predicated region
    $region118: #{sattention_pallas.1} parent=1 // pred_check
      _
    $region119: #{sattention_pallas.1} parent=1 // pred_check_branch
      %1427 = sbr.rel (0) target = $region121
    $region120: #{sattention_pallas.1} parent=1 // pred_region
      %s1429 = ssub.s32 64, 64
      %1430 = vsyncadd [#allocation4], %s1429
      %s1432 = sshll.u32 [#allocation19], 4
      %s1433 = int_to_ptr.vmem [resolvable:$true] %s1432
      %1435 = dma.vmem_to_hbm [thread:$0]  %s1433, 64, %s19, [#allocation4]
    $region121: #{sattention_pallas.1} parent=1 // pred_fallthru
      _
    // Predicated region
    $region122: #{sattention_pallas.1} parent=1 // pred_check
      _
    $region123: #{sattention_pallas.1} parent=1 // pred_check_branch
      %1437 = sbr.rel (0) target = $region125
    $region124: #{sattention_pallas.1} parent=1 // pred_region
      _
    $region125: #{sattention_pallas.1} parent=1 // pred_fallthru
      _
    // Predicated region
    $region126: #{sattention_pallas.1} parent=1 // pred_check
      _
    $region127: #{sattention_pallas.1} parent=1 // pred_check_branch
      %1439 = sbr.rel (0) target = $region129
    $region128: #{sattention_pallas.1} parent=1 // pred_region
      _
    $region129: #{sattention_pallas.1} parent=1 // pred_fallthru
      _
    // Predicated region
    $region130: #{sattention_pallas.1} parent=1 // pred_check
      _
    $region131: #{sattention_pallas.1} parent=1 // pred_check_branch
      %1441 = sbr.rel (0) target = $region133
    $region132: #{sattention_pallas.1} parent=1 // pred_region
      %1442 = dma.done [#allocation4], 64
    $region133: #{sattention_pallas.1} parent=1 // pred_fallthru
      _
    // Predicated region
    $region134: #{sattention_pallas.1} parent=1 // pred_check
      _
    $region135: #{sattention_pallas.1} parent=1 // pred_check_branch
      %1444 = sbr.rel (0) target = $region137
    $region136: #{sattention_pallas.1} parent=1 // pred_region
      _
    $region137: #{sattention_pallas.1} parent=1 // pred_fallthru
      _
    // Predicated region
    $region138: #{sattention_pallas.1} parent=1 // pred_check
      _
    $region139: #{sattention_pallas.1} parent=1 // pred_check_branch
      %1446 = sbr.rel (0) target = $region141
    $region140: #{sattention_pallas.1} parent=1 // pred_region
      _
    $region141: #{sattention_pallas.1} parent=1 // pred_fallthru
      _
    %1447 = vsyncpa [#allocation3], 1
    %1448 = vsyncpa [#allocation6], 1
    %1449 = vsyncpa [#allocation9], 1
    %1450 = vsyncpa [#allocation12], 1
    %1451 = vsyncpa [#allocation15], 1
    %1452 = vsyncpa [#allocation18], 1
    %1453 = vsyncpa [#allocation4], 1

</llo_original>
